<compile_context>
chip_gen: v7x
topology: tpu7x:2x2x1
jax: 0.10.0
libtpu: 0.0.40
codegen_flags: <defaults>
</compile_context>

<pallas_src>
import functools
import math

import jax
import jax.numpy as jnp
from jax.experimental import pallas as pl
from jax.experimental.pallas import tpu as pltpu

LANE = 128


def _round_up(x, m):
    return (x + m - 1) // m * m


# --------------------------------------------------------------------------
# Kernel
# --------------------------------------------------------------------------
def _lstm_classifier_kernel(num_layers, hp, *refs):
    """refs = (x, [W_igo^T (bf16), b_igo (f32)] * L, fc_W^T (bf16), fc_b (f32), out)."""
    x_ref = refs[0]
    out_ref = refs[-1]

    h = x_ref[...]                              # (TB, in_dim) bf16 (layer-0 input)
    idx = 1
    for _ in range(num_layers):
        w_ref = refs[idx]                       # (K, 3*Hp) bf16  -- forget gate dropped
        b_ref = refs[idx + 1]                   # (1, 3*Hp) f32   -- b_ih + b_hh pre-summed
        idx += 2

        gates = jnp.dot(h.astype(jnp.bfloat16), w_ref[...],
                        preferred_element_type=jnp.float32)
        gates = gates + b_ref[...]              # single broadcast add

        # sigmoid(x) == 0.5*(tanh(0.5*x)+1): keeps the divide off the VALU,
        # tanh runs on the otherwise-idle EUP slot.  Lane-aligned slices
        # (hp is a multiple of 128) -> whole-vreg VPU/EUP ops.
        i = 0.5 * (jnp.tanh(0.5 * gates[:, 0:hp]) + 1.0)
        g = jnp.tanh(gates[:, hp:2 * hp])
        o = 0.5 * (jnp.tanh(0.5 * gates[:, 2 * hp:3 * hp]) + 1.0)

        # c_prev == 0  =>  c = i * g (no forget-gate term).  Padded gate columns
        # have zero weight AND zero bias => g_pad == 0 => h_pad == 0 exactly,
        # so padded hidden lanes stay dead through the next layer / FC matmul.
        h = o * jnp.tanh(i * g)                 # (TB, Hp) f32
        # TODO(synk): if a bundle dump shows vld/vst spill saturation at large
        # TB*Hp, split the fused (TB, 3Hp) gate matmul into three per-gate dots
        # consumed immediately.

    fc_w_ref = refs[idx]                        # (Hp, Cp) bf16
    fc_b_ref = refs[idx + 1]                    # (1, Cp)  f32
    out = jnp.dot(h.astype(jnp.bfloat16), fc_w_ref[...],
                  preferred_element_type=jnp.float32)
    out_ref[...] = (out + fc_b_ref[...]).astype(out_ref.dtype)


# --------------------------------------------------------------------------
# Parameter preparation (drop forget gate, pre-sum biases, pad lanes, cast bf16)
# --------------------------------------------------------------------------
def prepare_params(raw, input_size, hidden_size, num_layers, num_classes):
    H = hidden_size
    Hp = _round_up(H, LANE)
    Cp = _round_up(num_classes, LANE)

    layers = []
    for l, lp in enumerate(raw["lstm"]):
        in_dim = input_size if l == 0 else H
        in_p = input_size if l == 0 else Hp       # layer-0 K dim left UNPADDED
        w_ih = lp["w_ih"]                         # (4H, in_dim), PyTorch gate order i,f,g,o
        b_sum = lp["b_ih"] + lp["b_hh"]           # (4H,)

        w_blocks, b_blocks = [], []
        for gate in (0, 2, 3):                    # keep i, g, o; drop f (dead: c_prev == 0)
            wg = w_ih[gate * H:(gate + 1) * H, :].T                       # (in_dim, H)
            wg = jnp.pad(wg, ((0, in_p - in_dim), (0, Hp - H)))           # (in_p, Hp)
            bg = jnp.pad(b_sum[gate * H:(gate + 1) * H], (0, Hp - H))     # (Hp,)
            w_blocks.append(wg)
            b_blocks.append(bg)

        # Invariant (do not change): padded gate columns must keep zero weights
        # and zero bias so g_pad = tanh(0) = 0 and the padded hidden lanes stay
        # exactly zero in every layer.
        w = jnp.concatenate(w_blocks, axis=1).astype(jnp.bfloat16)        # (in_p, 3*Hp)
        b = jnp.concatenate(b_blocks).reshape(1, -1).astype(jnp.float32)  # (1, 3*Hp)
        layers.append((w, b))

    fc_w = jnp.pad(raw["fc_w"].T,
                   ((0, Hp - H), (0, Cp - num_classes))).astype(jnp.bfloat16)   # (Hp, Cp)
    fc_b = jnp.pad(raw["fc_b"],
                   (0, Cp - num_classes)).reshape(1, -1).astype(jnp.float32)    # (1, Cp)
    # TODO(synk): if resident bf16 weights ever approach the VMEM cap, quantize
    # to fp8 on v7x (int8 on v5e/v6e) and re-validate against the f32 reference.
    return {"layers": layers, "fc_w": fc_w, "fc_b": fc_b, "Hp": Hp, "Cp": Cp}


# --------------------------------------------------------------------------
# Wrapper helpers
# --------------------------------------------------------------------------
def _choose_batch_tile(B):
    """Batch tile; the batch is padded up to a multiple of it.

    Prefers 256-512-row tiles for big batches (fills the 256-wide MXU M dim on
    v6e/v7x) while keeping >= 2 grid steps whenever there is enough work so the
    'parallel' batch axis can be spread over both v7x TensorCores."""
    b8 = _round_up(B, 8)
    if b8 <= 16:
        return 8
    for tb in (512, 256, 128, 64, 32, 16):
        if b8 >= 2 * tb:
            return tb
    return 8


def _vmem_block_bytes(shape, dtype):
    dims = list(shape)
    dims[-1] = _round_up(dims[-1], LANE)
    if len(dims) >= 2:
        sub = 8 if jnp.dtype(dtype).itemsize == 4 else 16
        dims[-2] = _round_up(dims[-2], sub)
    n = 1
    for d in dims:
        n *= d
    return n * jnp.dtype(dtype).itemsize


def _device_vmem_capacity():
    try:
        return int(pltpu.get_tpu_info().vmem_capacity_bytes)
    except Exception:
        return 64 << 20     # conservative: v7x per-TensorCore VMEM


# --------------------------------------------------------------------------
# Wrapper
# --------------------------------------------------------------------------
def lstm_classifier_forward(x, prepped, *, num_layers, num_classes):
    """x: (batch, input_size) float32 -> logits (batch, num_classes) float32."""
    B, in_dim = x.shape
    Hp, Cp = prepped["Hp"], prepped["Cp"]

    tb = _choose_batch_tile(B)
    Bpad = _round_up(B, tb)
    grid = (Bpad // tb,)

    # bf16 activation stream, batch padded to the tile, feature dim UNPADDED
    # (full-dim last block dim is legal and avoids 8x wasted x bandwidth).
    xp = jnp.pad(x, ((0, Bpad - B), (0, 0))).astype(jnp.bfloat16)      # (Bpad, in_dim)

    inputs = [xp]
    for w, bias in prepped["layers"]:
        inputs += [w, bias]
    inputs += [prepped["fc_w"], prepped["fc_b"]]

    # Cost estimate (HBM-bound custom call): matmul flops + 4 tanh/elem/layer.
    flops = 2 * Bpad * Hp * Cp
    for w, _ in prepped["layers"]:
        flops += 2 * Bpad * w.shape[0] * w.shape[1]
    transcendentals = 4 * Bpad * Hp * num_layers
    bytes_accessed = sum(int(a.size * jnp.dtype(a.dtype).itemsize) for a in inputs) \
        + Bpad * Cp * 4
    cost = pl.CostEstimate(flops=flops, transcendentals=transcendentals,
                           bytes_accessed=bytes_accessed)

    vmem_cap = _device_vmem_capacity()

    def run(single_buffer_weights):
        def resident_spec(shape):
            # Constant index_map -> block never changes across batch tiles;
            # single-buffering halves its VMEM (matters most on v7x's 64 MiB).
            imap = lambda b: (0,) * len(shape)
            if single_buffer_weights:
                return pl.BlockSpec(shape, imap, pipeline_mode=pl.Buffered(1))
            return pl.BlockSpec(shape, imap)

        in_specs = [pl.BlockSpec((tb, in_dim), lambda b: (b, 0))]
        for w, bias in prepped["layers"]:
            in_specs += [resident_spec(w.shape), resident_spec(bias.shape)]
        in_specs += [resident_spec(prepped["fc_w"].shape),
                     resident_spec(prepped["fc_b"].shape)]
        out_specs = pl.BlockSpec((tb, Cp), lambda b: (b, 0))

        # Explicit VMEM budget: streamed x/out blocks double-buffered, resident
        # weights single-buffered (or x2 on fallback), plus gate intermediates.
        wmult = 1 if single_buffer_weights else 2
        est = 2 * _vmem_block_bytes((tb, in_dim), jnp.bfloat16)
        est += 2 * _vmem_block_bytes((tb, Cp), jnp.float32)
        for a in inputs[1:]:
            est += wmult * _vmem_block_bytes(a.shape, a.dtype)
        est += 2 * tb * 3 * Hp * 4                        # gates / h live values
        vmem_limit = int(min(max(est + (4 << 20), 32 << 20), vmem_cap))
        # TODO(synk): for very large H (bf16 weights approaching the VMEM cap,
        # e.g. H >= ~2048 x 2 layers on v7x) add a layer/column grid axis or a
        # pltpu.emit_pipeline over stacked per-layer weights instead of keeping
        # every layer fully resident.

        kernel = functools.partial(_lstm_classifier_kernel, num_layers, Hp)
        return pl.pallas_call(
            kernel,
            out_shape=jax.ShapeDtypeStruct((Bpad, Cp), jnp.float32),
            grid=grid,
            in_specs=in_specs,
            out_specs=out_specs,
            compiler_params=pltpu.CompilerParams(
                dimension_semantics=("parallel",),        # batch tiles -> megacore / 2 TCs
                vmem_limit_bytes=vmem_limit),
            cost_estimate=cost,
        )(*inputs)

    try:
        out = jax.block_until_ready(run(True))
    except Exception:
        # pipeline_mode=pl.Buffered(1) not supported on this jax/libtpu:
        # fall back to default double-buffered resident weights.
        out = run(False)

    # TODO(synk): emit bf16 logits / fold this slice into the consumer if the
    # downstream tolerates it (halves the (Bpad, Cp) writeback).
    return out[:B, :num_classes]


# --------------------------------------------------------------------------
# Deterministic init matching the PyTorch module's parameter shapes
# --------------------------------------------------------------------------
def init_raw_params(key, input_size, hidden_size, num_layers, num_classes):
    k = 1.0 / math.sqrt(hidden_size)
    params = {"lstm": []}
    for l in range(num_layers):
        in_dim = input_size if l == 0 else hidden_size
        key, k1, k2, k3, k4 = jax.random.split(key, 5)
        w_ih = jax.random.uniform(k1, (4 * hidden_size, in_dim), jnp.float32, -k, k)
        # W_hh exists in the module but contributes zero here (seq_len == 1, zero h0).
        w_hh = jax.random.uniform(k2, (4 * hidden_size, hidden_size), jnp.float32, -k, k)
        b_ih = jax.random.uniform(k3, (4 * hidden_size,), jnp.float32, -k, k)
        b_hh = jax.random.uniform(k4, (4 * hidden_size,), jnp.float32, -k, k)
        params["lstm"].append({"w_ih": w_ih, "w_hh": w_hh, "b_ih": b_ih, "b_hh": b_hh})
    key, k5, k6 = jax.random.split(key, 3)
    params["fc_w"] = jax.random.uniform(k5, (num_classes, hidden_size), jnp.float32, -k, k)
    params["fc_b"] = jax.random.uniform(k6, (num_classes,), jnp.float32, -k, k)
    return params


# --------------------------------------------------------------------------
# Pure-JAX references
# --------------------------------------------------------------------------
def reference_forward_f32(x, raw, *, hidden_size):
    """Full-precision reference of the 1-step LSTM + FC (PyTorch semantics)."""
    H = hidden_size
    h = x.astype(jnp.float32)
    for lp in raw["lstm"]:
        gates = h @ lp["w_ih"].T + lp["b_ih"] + lp["b_hh"]   # h_prev @ W_hh^T == 0
        i = jax.nn.sigmoid(gates[:, 0:H])
        g = jnp.tanh(gates[:, 2 * H:3 * H])
        o = jax.nn.sigmoid(gates[:, 3 * H:4 * H])
        c = i * g                                            # c_prev == 0
        h = o * jnp.tanh(c)
    return h @ raw["fc_w"].T + raw["fc_b"]


def reference_forward_prepped(x, prepped, *, num_classes):
    """Reference using the exact prepped (padded, bf16) params and kernel math."""
    Hp = prepped["Hp"]
    h = x.astype(jnp.bfloat16)
    for w, b in prepped["layers"]:
        gates = jnp.dot(h.astype(jnp.bfloat16), w, preferred_element_type=jnp.float32) + b
        i = 0.5 * (jnp.tanh(0.5 * gates[:, 0:Hp]) + 1.0)
        g = jnp.tanh(gates[:, Hp:2 * Hp])
        o = 0.5 * (jnp.tanh(0.5 * gates[:, 2 * Hp:3 * Hp]) + 1.0)
        h = o * jnp.tanh(i * g)
    out = jnp.dot(h.astype(jnp.bfloat16), prepped["fc_w"],
                  preferred_element_type=jnp.float32) + prepped["fc_b"]
    return out[:, :num_classes]


# --------------------------------------------------------------------------
if __name__ == "__main__":
    batch, input_size, hidden_size, num_layers, num_classes = 2, 16, 32, 2, 4

    key = jax.random.PRNGKey(0)
    key, kx = jax.random.split(key)
    x = jax.random.normal(kx, (batch, input_size), jnp.float32)

    raw = init_raw_params(key, input_size, hidden_size, num_layers, num_classes)
    prepped = prepare_params(raw, input_size, hidden_size, num_layers, num_classes)

    out = lstm_classifier_forward(x, prepped, num_layers=num_layers,
                                  num_classes=num_classes)
    out = jax.block_until_ready(out)
    assert out.shape == (batch, num_classes)

    # Bit-for-bit-style check against the same bf16/padded math in plain JAX.
    ref_match = reference_forward_prepped(x, prepped, num_classes=num_classes)
    assert jnp.allclose(out, ref_match, atol=2e-3, rtol=2e-3), (out, ref_match)

    # Semantic check against the full-f32 PyTorch-equivalent forward.
    ref_f32 = reference_forward_f32(x, raw, hidden_size=hidden_size)
    assert jnp.allclose(out, ref_f32, atol=5e-2, rtol=5e-2), (out, ref_f32)

    print("KERNEL_OK")
</pallas_src>

<mosaic_0001>
module attributes {stable_mosaic.version = 11 : i64} {
  func.func @_lstm_classifier_kernel(%arg0: i32, %arg1: memref<8x16xbf16, #tpu.memory_space<vmem>>, %arg2: memref<16x384xbf16, #tpu.memory_space<vmem>>, %arg3: memref<1x384xf32, #tpu.memory_space<vmem>>, %arg4: memref<128x384xbf16, #tpu.memory_space<vmem>>, %arg5: memref<1x384xf32, #tpu.memory_space<vmem>>, %arg6: memref<128x128xbf16, #tpu.memory_space<vmem>>, %arg7: memref<1x128xf32, #tpu.memory_space<vmem>>, %arg8: memref<8x128xf32, #tpu.memory_space<vmem>>) attributes {dimension_semantics = [#tpu.dimension_semantics<parallel>], iteration_bounds = array<i64: 1>, scalar_prefetch = 0 : i64, scratch_operands = 0 : i64, tpu.core_type = #tpu.core_type<tc>, window_params = [{transform_indices = @transform_0, window_bounds = array<i64: 8, 16>}, {pipeline_mode = #tpu.pipeline_mode<synchronous>, transform_indices = @transform_1, window_bounds = array<i64: 16, 384>}, {pipeline_mode = #tpu.pipeline_mode<synchronous>, transform_indices = @transform_2, window_bounds = array<i64: 1, 384>}, {pipeline_mode = #tpu.pipeline_mode<synchronous>, transform_indices = @transform_3, window_bounds = array<i64: 128, 384>}, {pipeline_mode = #tpu.pipeline_mode<synchronous>, transform_indices = @transform_4, window_bounds = array<i64: 1, 384>}, {pipeline_mode = #tpu.pipeline_mode<synchronous>, transform_indices = @transform_5, window_bounds = array<i64: 128, 128>}, {pipeline_mode = #tpu.pipeline_mode<synchronous>, transform_indices = @transform_6, window_bounds = array<i64: 1, 128>}, {transform_indices = @transform_7, window_bounds = array<i64: 8, 128>}]} {
    %c0 = arith.constant 0 : index
    %c0_0 = arith.constant 0 : index
    %0 = vector.load %arg1[%c0, %c0_0] : memref<8x16xbf16, #tpu.memory_space<vmem>>, vector<8x16xbf16>
    %c0_1 = arith.constant 0 : index
    %c0_2 = arith.constant 0 : index
    %1 = vector.load %arg2[%c0_1, %c0_2] : memref<16x384xbf16, #tpu.memory_space<vmem>>, vector<16x384xbf16>
    %cst = arith.constant dense<0.000000e+00> : vector<8x384xf32>
    %2 = tpu.matmul %0, %1, %cst {dimension_numbers = #tpu.dot_dimension_numbers<[1], [0], [0], [1], [0, 0, 1, 1], [], []>} : vector<8x16xbf16>, vector<16x384xbf16>, vector<8x384xf32> -> vector<8x384xf32>
    %c0_3 = arith.constant 0 : index
    %c0_4 = arith.constant 0 : index
    %3 = vector.load %arg3[%c0_3, %c0_4] : memref<1x384xf32, #tpu.memory_space<vmem>>, vector<1x384xf32>
    %4 = vector.broadcast %3 : vector<1x384xf32> to vector<8x384xf32>
    %5 = arith.addf %2, %4 : vector<8x384xf32>
    %6 = vector.extract_strided_slice %5 {offsets = [0, 0], sizes = [8, 128], strides = [1, 1]} : vector<8x384xf32> to vector<8x128xf32>
    %cst_5 = arith.constant 5.000000e-01 : f32
    %7 = vector.broadcast %cst_5 : f32 to vector<8x128xf32>
    %8 = arith.mulf %7, %6 : vector<8x128xf32>
    %9 = math.tanh %8 : vector<8x128xf32>
    %cst_6 = arith.constant 1.000000e+00 : f32
    %10 = vector.broadcast %cst_6 : f32 to vector<8x128xf32>
    %11 = arith.addf %9, %10 : vector<8x128xf32>
    %cst_7 = arith.constant 5.000000e-01 : f32
    %12 = vector.broadcast %cst_7 : f32 to vector<8x128xf32>
    %13 = arith.mulf %12, %11 : vector<8x128xf32>
    %14 = vector.extract_strided_slice %5 {offsets = [0, 128], sizes = [8, 128], strides = [1, 1]} : vector<8x384xf32> to vector<8x128xf32>
    %15 = math.tanh %14 : vector<8x128xf32>
    %16 = vector.extract_strided_slice %5 {offsets = [0, 256], sizes = [8, 128], strides = [1, 1]} : vector<8x384xf32> to vector<8x128xf32>
    %cst_8 = arith.constant 5.000000e-01 : f32
    %17 = vector.broadcast %cst_8 : f32 to vector<8x128xf32>
    %18 = arith.mulf %17, %16 : vector<8x128xf32>
    %19 = math.tanh %18 : vector<8x128xf32>
    %cst_9 = arith.constant 1.000000e+00 : f32
    %20 = vector.broadcast %cst_9 : f32 to vector<8x128xf32>
    %21 = arith.addf %19, %20 : vector<8x128xf32>
    %cst_10 = arith.constant 5.000000e-01 : f32
    %22 = vector.broadcast %cst_10 : f32 to vector<8x128xf32>
    %23 = arith.mulf %22, %21 : vector<8x128xf32>
    %24 = arith.mulf %13, %15 : vector<8x128xf32>
    %25 = math.tanh %24 : vector<8x128xf32>
    %26 = arith.mulf %23, %25 : vector<8x128xf32>
    %27 = arith.truncf %26 : vector<8x128xf32> to vector<8x128xbf16>
    %c0_11 = arith.constant 0 : index
    %c0_12 = arith.constant 0 : index
    %28 = vector.load %arg4[%c0_11, %c0_12] : memref<128x384xbf16, #tpu.memory_space<vmem>>, vector<128x384xbf16>
    %cst_13 = arith.constant dense<0.000000e+00> : vector<8x384xf32>
    %29 = tpu.matmul %27, %28, %cst_13 {dimension_numbers = #tpu.dot_dimension_numbers<[1], [0], [0], [1], [0, 0, 1, 1], [], []>} : vector<8x128xbf16>, vector<128x384xbf16>, vector<8x384xf32> -> vector<8x384xf32>
    %c0_14 = arith.constant 0 : index
    %c0_15 = arith.constant 0 : index
    %30 = vector.load %arg5[%c0_14, %c0_15] : memref<1x384xf32, #tpu.memory_space<vmem>>, vector<1x384xf32>
    %31 = vector.broadcast %30 : vector<1x384xf32> to vector<8x384xf32>
    %32 = arith.addf %29, %31 : vector<8x384xf32>
    %33 = vector.extract_strided_slice %32 {offsets = [0, 0], sizes = [8, 128], strides = [1, 1]} : vector<8x384xf32> to vector<8x128xf32>
    %cst_16 = arith.constant 5.000000e-01 : f32
    %34 = vector.broadcast %cst_16 : f32 to vector<8x128xf32>
    %35 = arith.mulf %34, %33 : vector<8x128xf32>
    %36 = math.tanh %35 : vector<8x128xf32>
    %cst_17 = arith.constant 1.000000e+00 : f32
    %37 = vector.broadcast %cst_17 : f32 to vector<8x128xf32>
    %38 = arith.addf %36, %37 : vector<8x128xf32>
    %cst_18 = arith.constant 5.000000e-01 : f32
    %39 = vector.broadcast %cst_18 : f32 to vector<8x128xf32>
    %40 = arith.mulf %39, %38 : vector<8x128xf32>
    %41 = vector.extract_strided_slice %32 {offsets = [0, 128], sizes = [8, 128], strides = [1, 1]} : vector<8x384xf32> to vector<8x128xf32>
    %42 = math.tanh %41 : vector<8x128xf32>
    %43 = vector.extract_strided_slice %32 {offsets = [0, 256], sizes = [8, 128], strides = [1, 1]} : vector<8x384xf32> to vector<8x128xf32>
    %cst_19 = arith.constant 5.000000e-01 : f32
    %44 = vector.broadcast %cst_19 : f32 to vector<8x128xf32>
    %45 = arith.mulf %44, %43 : vector<8x128xf32>
    %46 = math.tanh %45 : vector<8x128xf32>
    %cst_20 = arith.constant 1.000000e+00 : f32
    %47 = vector.broadcast %cst_20 : f32 to vector<8x128xf32>
    %48 = arith.addf %46, %47 : vector<8x128xf32>
    %cst_21 = arith.constant 5.000000e-01 : f32
    %49 = vector.broadcast %cst_21 : f32 to vector<8x128xf32>
    %50 = arith.mulf %49, %48 : vector<8x128xf32>
    %51 = arith.mulf %40, %42 : vector<8x128xf32>
    %52 = math.tanh %51 : vector<8x128xf32>
    %53 = arith.mulf %50, %52 : vector<8x128xf32>
    %54 = arith.truncf %53 : vector<8x128xf32> to vector<8x128xbf16>
    %c0_22 = arith.constant 0 : index
    %c0_23 = arith.constant 0 : index
    %55 = vector.load %arg6[%c0_22, %c0_23] : memref<128x128xbf16, #tpu.memory_space<vmem>>, vector<128x128xbf16>
    %cst_24 = arith.constant dense<0.000000e+00> : vector<8x128xf32>
    %56 = tpu.matmul %54, %55, %cst_24 {dimension_numbers = #tpu.dot_dimension_numbers<[1], [0], [0], [1], [0, 0, 1, 1], [], []>} : vector<8x128xbf16>, vector<128x128xbf16>, vector<8x128xf32> -> vector<8x128xf32>
    %c0_25 = arith.constant 0 : index
    %c0_26 = arith.constant 0 : index
    %57 = vector.load %arg7[%c0_25, %c0_26] : memref<1x128xf32, #tpu.memory_space<vmem>>, vector<1x128xf32>
    %58 = vector.broadcast %57 : vector<1x128xf32> to vector<8x128xf32>
    %59 = arith.addf %56, %58 : vector<8x128xf32>
    %c0_27 = arith.constant 0 : index
    %c0_28 = arith.constant 0 : index
    %60 = vector.load %arg8[%c0_27, %c0_28] : memref<8x128xf32, #tpu.memory_space<vmem>>, vector<8x128xf32>
    tpu.vector_store %arg8[%c0_27, %c0_28], %59 {strides = array<i32>} : memref<8x128xf32, #tpu.memory_space<vmem>>, vector<8x128xf32>,
    return
  }
  func.func @transform_0(%arg0: i32) -> (i32, i32) {
    %c0_i32 = arith.constant 0 : i32
    %c0_i32_0 = arith.constant 0 : i32
    return %arg0, %c0_i32 : i32, i32
  }
  func.func @transform_1(%arg0: i32) -> (i32, i32) {
    %c0_i32 = arith.constant 0 : i32
    %c0_i32_0 = arith.constant 0 : i32
    %c0_i32_1 = arith.constant 0 : i32
    return %c0_i32, %c0_i32_0 : i32, i32
  }
  func.func @transform_2(%arg0: i32) -> (i32, i32) {
    %c0_i32 = arith.constant 0 : i32
    %c0_i32_0 = arith.constant 0 : i32
    %c0_i32_1 = arith.constant 0 : i32
    return %c0_i32, %c0_i32_0 : i32, i32
  }
  func.func @transform_3(%arg0: i32) -> (i32, i32) {
    %c0_i32 = arith.constant 0 : i32
    %c0_i32_0 = arith.constant 0 : i32
    %c0_i32_1 = arith.constant 0 : i32
    return %c0_i32, %c0_i32_0 : i32, i32
  }
  func.func @transform_4(%arg0: i32) -> (i32, i32) {
    %c0_i32 = arith.constant 0 : i32
    %c0_i32_0 = arith.constant 0 : i32
    %c0_i32_1 = arith.constant 0 : i32
    return %c0_i32, %c0_i32_0 : i32, i32
  }
  func.func @transform_5(%arg0: i32) -> (i32, i32) {
    %c0_i32 = arith.constant 0 : i32
    %c0_i32_0 = arith.constant 0 : i32
    %c0_i32_1 = arith.constant 0 : i32
    return %c0_i32, %c0_i32_0 : i32, i32
  }
  func.func @transform_6(%arg0: i32) -> (i32, i32) {
    %c0_i32 = arith.constant 0 : i32
    %c0_i32_0 = arith.constant 0 : i32
    %c0_i32_1 = arith.constant 0 : i32
    return %c0_i32, %c0_i32_0 : i32, i32
  }
  func.func @transform_7(%arg0: i32) -> (i32, i32) {
    %c0_i32 = arith.constant 0 : i32
    %c0_i32_0 = arith.constant 0 : i32
    return %arg0, %c0_i32 : i32, i32
  }
}

module attributes {stable_mosaic.version = 11 : i64} {
  func.func @_lstm_classifier_kernel(%arg0: i32, %arg1: memref<8x16xbf16, #tpu.memory_space<vmem>>, %arg2: memref<16x384xbf16, #tpu.memory_space<vmem>>, %arg3: memref<1x384xf32, #tpu.memory_space<vmem>>, %arg4: memref<128x384xbf16, #tpu.memory_space<vmem>>, %arg5: memref<1x384xf32, #tpu.memory_space<vmem>>, %arg6: memref<128x128xbf16, #tpu.memory_space<vmem>>, %arg7: memref<1x128xf32, #tpu.memory_space<vmem>>, %arg8: memref<8x128xf32, #tpu.memory_space<vmem>>) attributes {dimension_semantics = [#tpu.dimension_semantics<parallel>], iteration_bounds = array<i64: 1>, scalar_prefetch = 0 : i64, scratch_operands = 0 : i64, tpu.core_type = #tpu.core_type<tc>, window_params = [{transform_indices = @transform_0, window_bounds = array<i64: 8, 16>}, {pipeline_mode = #tpu.pipeline_mode<synchronous>, transform_indices = @transform_1, window_bounds = array<i64: 16, 384>}, {pipeline_mode = #tpu.pipeline_mode<synchronous>, transform_indices = @transform_2, window_bounds = array<i64: 1, 384>}, {pipeline_mode = #tpu.pipeline_mode<synchronous>, transform_indices = @transform_3, window_bounds = array<i64: 128, 384>}, {pipeline_mode = #tpu.pipeline_mode<synchronous>, transform_indices = @transform_4, window_bounds = array<i64: 1, 384>}, {pipeline_mode = #tpu.pipeline_mode<synchronous>, transform_indices = @transform_5, window_bounds = array<i64: 128, 128>}, {pipeline_mode = #tpu.pipeline_mode<synchronous>, transform_indices = @transform_6, window_bounds = array<i64: 1, 128>}, {transform_indices = @transform_7, window_bounds = array<i64: 8, 128>}]} {
    %c0 = arith.constant 0 : index
    %c0_0 = arith.constant 0 : index
    %0 = vector.load %arg1[%c0, %c0_0] : memref<8x16xbf16, #tpu.memory_space<vmem>>, vector<8x16xbf16>
    %c0_1 = arith.constant 0 : index
    %c0_2 = arith.constant 0 : index
    %1 = vector.load %arg2[%c0_1, %c0_2] : memref<16x384xbf16, #tpu.memory_space<vmem>>, vector<16x384xbf16>
    %cst = arith.constant dense<0.000000e+00> : vector<8x384xf32>
    %2 = tpu.matmul %0, %1, %cst {dimension_numbers = #tpu.dot_dimension_numbers<[1], [0], [0], [1], [0, 0, 1, 1], [], []>} : vector<8x16xbf16>, vector<16x384xbf16>, vector<8x384xf32> -> vector<8x384xf32>
    %c0_3 = arith.constant 0 : index
    %c0_4 = arith.constant 0 : index
    %3 = vector.load %arg3[%c0_3, %c0_4] : memref<1x384xf32, #tpu.memory_space<vmem>>, vector<1x384xf32>
    %4 = vector.broadcast %3 : vector<1x384xf32> to vector<8x384xf32>
    %5 = arith.addf %2, %4 : vector<8x384xf32>
    %6 = vector.extract_strided_slice %5 {offsets = [0, 0], sizes = [8, 128], strides = [1, 1]} : vector<8x384xf32> to vector<8x128xf32>
    %cst_5 = arith.constant 5.000000e-01 : f32
    %7 = vector.broadcast %cst_5 : f32 to vector<8x128xf32>
    %8 = arith.mulf %7, %6 : vector<8x128xf32>
    %9 = math.tanh %8 : vector<8x128xf32>
    %cst_6 = arith.constant 1.000000e+00 : f32
    %10 = vector.broadcast %cst_6 : f32 to vector<8x128xf32>
    %11 = arith.addf %9, %10 : vector<8x128xf32>
    %cst_7 = arith.constant 5.000000e-01 : f32
    %12 = vector.broadcast %cst_7 : f32 to vector<8x128xf32>
    %13 = arith.mulf %12, %11 : vector<8x128xf32>
    %14 = vector.extract_strided_slice %5 {offsets = [0, 128], sizes = [8, 128], strides = [1, 1]} : vector<8x384xf32> to vector<8x128xf32>
    %15 = math.tanh %14 : vector<8x128xf32>
    %16 = vector.extract_strided_slice %5 {offsets = [0, 256], sizes = [8, 128], strides = [1, 1]} : vector<8x384xf32> to vector<8x128xf32>
    %cst_8 = arith.constant 5.000000e-01 : f32
    %17 = vector.broadcast %cst_8 : f32 to vector<8x128xf32>
    %18 = arith.mulf %17, %16 : vector<8x128xf32>
    %19 = math.tanh %18 : vector<8x128xf32>
    %cst_9 = arith.constant 1.000000e+00 : f32
    %20 = vector.broadcast %cst_9 : f32 to vector<8x128xf32>
    %21 = arith.addf %19, %20 : vector<8x128xf32>
    %cst_10 = arith.constant 5.000000e-01 : f32
    %22 = vector.broadcast %cst_10 : f32 to vector<8x128xf32>
    %23 = arith.mulf %22, %21 : vector<8x128xf32>
    %24 = arith.mulf %13, %15 : vector<8x128xf32>
    %25 = math.tanh %24 : vector<8x128xf32>
    %26 = arith.mulf %23, %25 : vector<8x128xf32>
    %27 = arith.truncf %26 : vector<8x128xf32> to vector<8x128xbf16>
    %c0_11 = arith.constant 0 : index
    %c0_12 = arith.constant 0 : index
    %28 = vector.load %arg4[%c0_11, %c0_12] : memref<128x384xbf16, #tpu.memory_space<vmem>>, vector<128x384xbf16>
    %cst_13 = arith.constant dense<0.000000e+00> : vector<8x384xf32>
    %29 = tpu.matmul %27, %28, %cst_13 {dimension_numbers = #tpu.dot_dimension_numbers<[1], [0], [0], [1], [0, 0, 1, 1], [], []>} : vector<8x128xbf16>, vector<128x384xbf16>, vector<8x384xf32> -> vector<8x384xf32>
    %c0_14 = arith.constant 0 : index
    %c0_15 = arith.constant 0 : index
    %30 = vector.load %arg5[%c0_14, %c0_15] : memref<1x384xf32, #tpu.memory_space<vmem>>, vector<1x384xf32>
    %31 = vector.broadcast %30 : vector<1x384xf32> to vector<8x384xf32>
    %32 = arith.addf %29, %31 : vector<8x384xf32>
    %33 = vector.extract_strided_slice %32 {offsets = [0, 0], sizes = [8, 128], strides = [1, 1]} : vector<8x384xf32> to vector<8x128xf32>
    %cst_16 = arith.constant 5.000000e-01 : f32
    %34 = vector.broadcast %cst_16 : f32 to vector<8x128xf32>
    %35 = arith.mulf %34, %33 : vector<8x128xf32>
    %36 = math.tanh %35 : vector<8x128xf32>
    %cst_17 = arith.constant 1.000000e+00 : f32
    %37 = vector.broadcast %cst_17 : f32 to vector<8x128xf32>
    %38 = arith.addf %36, %37 : vector<8x128xf32>
    %cst_18 = arith.constant 5.000000e-01 : f32
    %39 = vector.broadcast %cst_18 : f32 to vector<8x128xf32>
    %40 = arith.mulf %39, %38 : vector<8x128xf32>
    %41 = vector.extract_strided_slice %32 {offsets = [0, 128], sizes = [8, 128], strides = [1, 1]} : vector<8x384xf32> to vector<8x128xf32>
    %42 = math.tanh %41 : vector<8x128xf32>
    %43 = vector.extract_strided_slice %32 {offsets = [0, 256], sizes = [8, 128], strides = [1, 1]} : vector<8x384xf32> to vector<8x128xf32>
    %cst_19 = arith.constant 5.000000e-01 : f32
    %44 = vector.broadcast %cst_19 : f32 to vector<8x128xf32>
    %45 = arith.mulf %44, %43 : vector<8x128xf32>
    %46 = math.tanh %45 : vector<8x128xf32>
    %cst_20 = arith.constant 1.000000e+00 : f32
    %47 = vector.broadcast %cst_20 : f32 to vector<8x128xf32>
    %48 = arith.addf %46, %47 : vector<8x128xf32>
    %cst_21 = arith.constant 5.000000e-01 : f32
    %49 = vector.broadcast %cst_21 : f32 to vector<8x128xf32>
    %50 = arith.mulf %49, %48 : vector<8x128xf32>
    %51 = arith.mulf %40, %42 : vector<8x128xf32>
    %52 = math.tanh %51 : vector<8x128xf32>
    %53 = arith.mulf %50, %52 : vector<8x128xf32>
    %54 = arith.truncf %53 : vector<8x128xf32> to vector<8x128xbf16>
    %c0_22 = arith.constant 0 : index
    %c0_23 = arith.constant 0 : index
    %55 = vector.load %arg6[%c0_22, %c0_23] : memref<128x128xbf16, #tpu.memory_space<vmem>>, vector<128x128xbf16>
    %cst_24 = arith.constant dense<0.000000e+00> : vector<8x128xf32>
    %56 = tpu.matmul %54, %55, %cst_24 {dimension_numbers = #tpu.dot_dimension_numbers<[1], [0], [0], [1], [0, 0, 1, 1], [], []>} : vector<8x128xbf16>, vector<128x128xbf16>, vector<8x128xf32> -> vector<8x128xf32>
    %c0_25 = arith.constant 0 : index
    %c0_26 = arith.constant 0 : index
    %57 = vector.load %arg7[%c0_25, %c0_26] : memref<1x128xf32, #tpu.memory_space<vmem>>, vector<1x128xf32>
    %58 = vector.broadcast %57 : vector<1x128xf32> to vector<8x128xf32>
    %59 = arith.addf %56, %58 : vector<8x128xf32>
    %c0_27 = arith.constant 0 : index
    %c0_28 = arith.constant 0 : index
    %60 = vector.load %arg8[%c0_27, %c0_28] : memref<8x128xf32, #tpu.memory_space<vmem>>, vector<8x128xf32>
    tpu.vector_store %arg8[%c0_27, %c0_28], %59 {strides = array<i32>} : memref<8x128xf32, #tpu.memory_space<vmem>>, vector<8x128xf32>,
    return
  }
  func.func @transform_0(%arg0: i32) -> (i32, i32) {
    %c0_i32 = arith.constant 0 : i32
    %c0_i32_0 = arith.constant 0 : i32
    return %arg0, %c0_i32 : i32, i32
  }
  func.func @transform_1(%arg0: i32) -> (i32, i32) {
    %c0_i32 = arith.constant 0 : i32
    %c0_i32_0 = arith.constant 0 : i32
    %c0_i32_1 = arith.constant 0 : i32
    return %c0_i32, %c0_i32_0 : i32, i32
  }
  func.func @transform_2(%arg0: i32) -> (i32, i32) {
    %c0_i32 = arith.constant 0 : i32
    %c0_i32_0 = arith.constant 0 : i32
    %c0_i32_1 = arith.constant 0 : i32
    return %c0_i32, %c0_i32_0 : i32, i32
  }
  func.func @transform_3(%arg0: i32) -> (i32, i32) {
    %c0_i32 = arith.constant 0 : i32
    %c0_i32_0 = arith.constant 0 : i32
    %c0_i32_1 = arith.constant 0 : i32
    return %c0_i32, %c0_i32_0 : i32, i32
  }
  func.func @transform_4(%arg0: i32) -> (i32, i32) {
    %c0_i32 = arith.constant 0 : i32
    %c0_i32_0 = arith.constant 0 : i32
    %c0_i32_1 = arith.constant 0 : i32
    return %c0_i32, %c0_i32_0 : i32, i32
  }
  func.func @transform_5(%arg0: i32) -> (i32, i32) {
    %c0_i32 = arith.constant 0 : i32
    %c0_i32_0 = arith.constant 0 : i32
    %c0_i32_1 = arith.constant 0 : i32
    return %c0_i32, %c0_i32_0 : i32, i32
  }
  func.func @transform_6(%arg0: i32) -> (i32, i32) {
    %c0_i32 = arith.constant 0 : i32
    %c0_i32_0 = arith.constant 0 : i32
    %c0_i32_1 = arith.constant 0 : i32
    return %c0_i32, %c0_i32_0 : i32, i32
  }
  func.func @transform_7(%arg0: i32) -> (i32, i32) {
    %c0_i32 = arith.constant 0 : i32
    %c0_i32_0 = arith.constant 0 : i32
    return %arg0, %c0_i32 : i32, i32
  }
}

</mosaic_0001>

<llo_original>
// kernel: tpu_custom_call.1
$region0: #{tpu_custom_call.1}
  #allocation0 [shape = 'u32[]', space=smem, size = 0x4, offset = 0x4, fixed_abs, tag = 'smem constant byte address 0x4 - core index']
  #allocation1 [shape = 'u32[144,128]{1,0:T(1,128)}', space=vmem, size = 0x12000, scoped, tag = 'internal scratch']
  %s0 = inlined_call_operand.hbm [shape: bf16[8,16], index: 0, kind: input, shape index: {}]
  %s1 = inlined_call_operand.hbm [shape: bf16[16,384], index: 1, kind: input, shape index: {}]
  %s2 = inlined_call_operand.vmem [shape: f32[1,384], index: 2, kind: input, shape index: {}]
  %s3 = inlined_call_operand.hbm [shape: bf16[128,384], index: 3, kind: input, shape index: {}]
  %s4 = inlined_call_operand.vmem [shape: f32[1,384], index: 4, kind: input, shape index: {}]
  %s5 = inlined_call_operand.hbm [shape: bf16[128,128], index: 5, kind: input, shape index: {}]
  %s6 = inlined_call_operand.vmem [shape: f32[1,128], index: 6, kind: input, shape index: {}]
  %s7 = inlined_call_operand.hbm [shape: f32[8,128], index: 7, kind: output, shape index: {}]
  %s8 = sld [smem:[#allocation0]]
  $region54: #{tpu_custom_call.1} parent=0
    _
  %s10 = ssub.s32 1, %s8
  %s11 = scalar_select 0, %s10, %s8
  $region1: #{tpu_custom_call.1} parent=0
    #allocation2 [shape = 'u8[2048]{0}', space=vmem, size = 0x800, scoped, tag = 'input window, operand 0, single buffered']
    #allocation3 [shape = 's32[1]{0}', space=sflag, size = 0x4, scoped, tag = 'scoped memory for tpu_custom_call.1']
    #allocation4 [shape = 's32[1]{0}', space=sflag, size = 0x4, scoped, tag = 'scoped memory for tpu_custom_call.1']
    #allocation5 [shape = 'u8[12288]{0}', space=vmem, size = 0x3000, scoped, tag = 'input window, operand 1, single buffered']
    #allocation6 [shape = 's32[1]{0}', space=sflag, size = 0x4, scoped, tag = 'scoped memory for tpu_custom_call.1']
    #allocation7 [shape = 'u8[98304]{0}', space=vmem, size = 0x18000, scoped, tag = 'input window, operand 3, single buffered']
    #allocation8 [shape = 'u8[32768]{0}', space=vmem, size = 0x8000, scoped, tag = 'input window, operand 5, single buffered']
    #allocation9 [shape = 's32[1]{0}', space=sflag, size = 0x4, scoped, tag = 'scoped memory for tpu_custom_call.1']
    #allocation10 [shape = 'u8[4096]{0}', space=vmem, size = 0x1000, scoped, tag = 'output window, operand 0, single buffered']
    %12 = vsyncpa [#allocation3], 0
    %13 = vsyncpa [#allocation6], 0
    %14 = vsyncpa [#allocation9], 0
    %15 = vsyncpa [#allocation4], 0
    // Predicated region
    $region2: #{tpu_custom_call.1} parent=1 // pred_check
      _
    $region3: #{tpu_custom_call.1} parent=1 // pred_check_branch
      %17 = sbr.rel (0) target = $region5
    $region4: #{tpu_custom_call.1} parent=1 // pred_region
      %s19 = ssub.s32 64, 64
      %20 = vsyncadd [#allocation3], %s19
      %s22 = sshll.u32 [#allocation2], 4
      %s23 = int_to_ptr.vmem [resolvable:$true] %s22
      %25 = dma.hbm_to_vmem [thread:$0]  %s0, 64, %s23, [#allocation3]
    $region5: #{tpu_custom_call.1} parent=1 // pred_fallthru
      _
    // Predicated region
    $region6: #{tpu_custom_call.1} parent=1 // pred_check
      _
    $region7: #{tpu_custom_call.1} parent=1 // pred_check_branch
      %27 = sbr.rel (0) target = $region9
    $region8: #{tpu_custom_call.1} parent=1 // pred_region
      %s29 = ssub.s32 384, 384
      %30 = vsyncadd [#allocation6], %s29
      %s31 = sshll.u32 [#allocation5], 4
      %s32 = int_to_ptr.vmem [resolvable:$true] %s31
      %37 = dma.hbm_to_vmem [thread:$0]  %s1, 384, %s32, [#allocation6], 192, 192, 12
    $region9: #{tpu_custom_call.1} parent=1 // pred_fallthru
      _
    // Predicated region
    $region10: #{tpu_custom_call.1} parent=1 // pred_check
      _
    $region11: #{tpu_custom_call.1} parent=1 // pred_check_branch
      %39 = sbr.rel (0) target = $region13
    $region12: #{tpu_custom_call.1} parent=1 // pred_region
      _
    $region13: #{tpu_custom_call.1} parent=1 // pred_fallthru
      _
    // Predicated region
    $region14: #{tpu_custom_call.1} parent=1 // pred_check
      _
    $region15: #{tpu_custom_call.1} parent=1 // pred_check_branch
      %41 = sbr.rel (0) target = $region17
    $region16: #{tpu_custom_call.1} parent=1 // pred_region
      %s43 = ssub.s32 3072, 3072
      %44 = vsyncadd [#allocation6], %s43
      %s45 = sshll.u32 [#allocation7], 4
      %s46 = int_to_ptr.vmem [resolvable:$true] %s45
      %51 = dma.hbm_to_vmem [thread:$0]  %s3, 3072, %s46, [#allocation6], 192, 192, 12
    $region17: #{tpu_custom_call.1} parent=1 // pred_fallthru
      _
    // Predicated region
    $region18: #{tpu_custom_call.1} parent=1 // pred_check
      _
    $region19: #{tpu_custom_call.1} parent=1 // pred_check_branch
      %53 = sbr.rel (0) target = $region21
    $region20: #{tpu_custom_call.1} parent=1 // pred_region
      _
    $region21: #{tpu_custom_call.1} parent=1 // pred_fallthru
      _
    // Predicated region
    $region22: #{tpu_custom_call.1} parent=1 // pred_check
      _
    $region23: #{tpu_custom_call.1} parent=1 // pred_check_branch
      %55 = sbr.rel (0) target = $region25
    $region24: #{tpu_custom_call.1} parent=1 // pred_region
      %s57 = ssub.s32 1024, 1024
      %58 = vsyncadd [#allocation9], %s57
      %s59 = sshll.u32 [#allocation8], 4
      %s60 = int_to_ptr.vmem [resolvable:$true] %s59
      %65 = dma.hbm_to_vmem [thread:$0]  %s5, 1024, %s60, [#allocation9], 64, 64, 4
    $region25: #{tpu_custom_call.1} parent=1 // pred_fallthru
      _
    // Predicated region
    $region26: #{tpu_custom_call.1} parent=1 // pred_check
      _
    $region27: #{tpu_custom_call.1} parent=1 // pred_check_branch
      %67 = sbr.rel (0) target = $region29
    $region28: #{tpu_custom_call.1} parent=1 // pred_region
      _
    $region29: #{tpu_custom_call.1} parent=1 // pred_fallthru
      _
    // Predicated region
    $region30: #{tpu_custom_call.1} parent=1 // pred_check
      _
    $region31: #{tpu_custom_call.1} parent=1 // pred_check_branch
      %69 = sbr.rel (0) target = $region33
    $region32: #{tpu_custom_call.1} parent=1 // pred_region
      %70 = dma.done [#allocation3], 64
    $region33: #{tpu_custom_call.1} parent=1 // pred_fallthru
      _
    // Predicated region
    $region34: #{tpu_custom_call.1} parent=1 // pred_check
      _
    $region35: #{tpu_custom_call.1} parent=1 // pred_check_branch
      %72 = sbr.rel (0) target = $region37
    $region36: #{tpu_custom_call.1} parent=1 // pred_region
      %73 = dma.done [#allocation6], 384
    $region37: #{tpu_custom_call.1} parent=1 // pred_fallthru
      _
    // Predicated region
    $region38: #{tpu_custom_call.1} parent=1 // pred_check
      _
    $region39: #{tpu_custom_call.1} parent=1 // pred_check_branch
      %75 = sbr.rel (0) target = $region41
    $region40: #{tpu_custom_call.1} parent=1 // pred_region
      %76 = dma.done [#allocation6], 3072
    $region41: #{tpu_custom_call.1} parent=1 // pred_fallthru
      _
    // Predicated region
    $region42: #{tpu_custom_call.1} parent=1 // pred_check
      _
    $region43: #{tpu_custom_call.1} parent=1 // pred_check_branch
      %78 = sbr.rel (0) target = $region45
    $region44: #{tpu_custom_call.1} parent=1 // pred_region
      %79 = dma.done [#allocation9], 1024
    $region45: #{tpu_custom_call.1} parent=1 // pred_fallthru
      _
    %v81 = vld [vmem:[#allocation2] sm:$0xf]
    %v82 = vld [vmem:[#allocation5] sm:$0xff]
    %v83 = vld [vmem:[#allocation5 + $0x8] sm:$0xf]
    %v84 = vld [vmem:[#allocation5 + $0xc] sm:$0xff]
    %v85 = vld [vmem:[#allocation5 + $0x14] sm:$0xf]
    %v86 = vld [vmem:[%s2] sm:$0x7]
    %v88 = vlaneseq
    %v89 = vshrl.u32 %v88, 7
    %v90 = vsub.s32 0, %v89
    %v91 = vrot.slane %v86, %v90
    %v92 = vlaneseq
    %v93 = vshrl.u32 %v92, 7
    %v94 = vsub.s32 1, %v93
    %v95 = vrot.slane %v86, %v94
    %v96 = vlaneseq
    %v97 = vshrl.u32 %v96, 7
    %v98 = vsub.s32 2, %v97
    %v99 = vrot.slane %v86, %v98
    %v107 = vunpack.c.l.b16 %v82
    %v108 = vunpack.c.h.b16 %v82
    %v109 = vunpack.c.l.b16 %v83
    %v110 = vunpack.c.l.b16 %v84
    %v111 = vunpack.c.h.b16 %v84
    %v112 = vunpack.c.l.b16 %v85
    %v113 = vpack.c.b16 %v110, %v107
    %v114 = vpack.c.b16 %v111, %v108
    %v115 = vpack.c.b16 %v112, %v109
    %vm119 = vcmask 130048
    %v121 = vsel %vm119, %v81, 0
    %123 = vmatprep.subr.bf16.mxu0 %v114
    %124 = vmatpush1.bf16.msra.mxu0 %v113
    %125 = vmatprep.subr.bf16.mxu0 0
    %126 = vmatpush1.bf16.msra.mxu0 0
    %127 = vmatprep.subr.bf16.mxu0 0
    %128 = vmatpush1.bf16.msra.mxu0 0
    %129 = vmatprep.subr.bf16.mxu0 0
    %130 = vmatpush1.bf16.msra.mxu0 0
    %131 = vmatprep.subr.bf16.mxu0 0
    %132 = vmatpush1.bf16.msra.mxu0 0
    %133 = vmatprep.subr.bf16.mxu0 0
    %134 = vmatpush1.bf16.msra.mxu0 0
    %135 = vmatprep.subr.bf16.mxu0 0
    %136 = vmatpush1.bf16.msra.mxu0 0
    %137 = vmatprep.subr.bf16.mxu0 0
    %138 = vmatpush1.bf16.msra.mxu0 0
    %139 = vmatprep.subr.bf16.mxu0 0
    %140 = vmatpush1.bf16.msra.mxu0 0
    %141 = vmatprep.subr.bf16.mxu0 0
    %142 = vmatpush1.bf16.msra.mxu0 0
    %143 = vmatprep.subr.bf16.mxu0 0
    %144 = vmatpush1.bf16.msra.mxu0 0
    %145 = vmatprep.subr.bf16.mxu0 0
    %146 = vmatpush1.bf16.msra.mxu0 0
    %147 = vmatprep.subr.bf16.mxu0 0
    %148 = vmatpush1.bf16.msra.mxu0 0
    %149 = vmatprep.subr.bf16.mxu0 0
    %150 = vmatpush1.bf16.msra.mxu0 0
    %151 = vmatprep.subr.bf16.mxu0 0
    %152 = vmatpush1.bf16.msra.mxu0 0
    %153 = vmatprep.subr.bf16.mxu0 0
    %154 = vmatpush1.bf16.msra.mxu0 0
    %155 = vmatprep.mubr.bf16.mxu0 0
    %156 = vmatmul.mubr.bf16.gmra.mrb[0].mxu0 %v121
    %v157 = vpop.f32.mrb[0].mxu0
    %v158 = vadd.f32 %v91, %v157
    %v159 = vpop.f32.mrb[0].mxu0
    %v160 = vadd.f32 %v95, %v159
    %v161 = vpop.f32.mrb[0].mxu0
    %v162 = vpop.f32.mrb[0].mxu0
    %163 = vdwg.mxu0
    %164 = vmatprep.subr.bf16.mxu0 0
    %165 = vmatpush1.bf16.msra.mxu0 %v115
    %166 = vmatprep.subr.bf16.mxu0 0
    %167 = vmatpush1.bf16.msra.mxu0 0
    %168 = vmatprep.subr.bf16.mxu0 0
    %169 = vmatpush1.bf16.msra.mxu0 0
    %170 = vmatprep.subr.bf16.mxu0 0
    %171 = vmatpush1.bf16.msra.mxu0 0
    %172 = vmatprep.subr.bf16.mxu0 0
    %173 = vmatpush1.bf16.msra.mxu0 0
    %174 = vmatprep.subr.bf16.mxu0 0
    %175 = vmatpush1.bf16.msra.mxu0 0
    %176 = vmatprep.subr.bf16.mxu0 0
    %177 = vmatpush1.bf16.msra.mxu0 0
    %178 = vmatprep.subr.bf16.mxu0 0
    %179 = vmatpush1.bf16.msra.mxu0 0
    %180 = vmatprep.subr.bf16.mxu0 0
    %181 = vmatpush1.bf16.msra.mxu0 0
    %182 = vmatprep.subr.bf16.mxu0 0
    %183 = vmatpush1.bf16.msra.mxu0 0
    %184 = vmatprep.subr.bf16.mxu0 0
    %185 = vmatpush1.bf16.msra.mxu0 0
    %186 = vmatprep.subr.bf16.mxu0 0
    %187 = vmatpush1.bf16.msra.mxu0 0
    %188 = vmatprep.subr.bf16.mxu0 0
    %189 = vmatpush1.bf16.msra.mxu0 0
    %190 = vmatprep.subr.bf16.mxu0 0
    %191 = vmatpush1.bf16.msra.mxu0 0
    %192 = vmatprep.subr.bf16.mxu0 0
    %193 = vmatpush1.bf16.msra.mxu0 0
    %194 = vmatprep.subr.bf16.mxu0 0
    %195 = vmatpush1.bf16.msra.mxu0 0
    %196 = vmatprep.mubr.bf16.mxu0 0
    %197 = vmatmul.mubr.bf16.gmra.mrb[0].mxu0 %v121
    %v198 = vpop.f32.mrb[0].mxu0
    %v199 = vadd.f32 %v99, %v198
    %v200 = vpop.f32.mrb[0].mxu0
    %v201 = vpop.f32.mrb[0].mxu0
    %v202 = vpop.f32.mrb[0].mxu0
    %203 = vdwg.mxu0
    %v204 = vmul.f32 %v158, 0.5
    %v205 = vtanh.pop %v204
    %v206 = vadd.f32 %v205, 1.0
    %v207 = vmul.f32 %v206, 0.5
    %v208 = vtanh.pop %v160
    %v209 = vmul.f32 %v199, 0.5
    %v210 = vtanh.pop %v209
    %v211 = vadd.f32 %v210, 1.0
    %v212 = vmul.f32 %v211, 0.5
    %v213 = vmul.f32 %v207, %v208
    %v214 = vtanh.pop %v213
    %v215 = vmul.f32 %v212, %v214
    %v216 = vpack.c.bf16 %v215, %v215
    %v217 = vld [vmem:[#allocation7] sm:$0xff]
    %v218 = vld [vmem:[#allocation7 + $0x8] sm:$0xf]
    %v219 = vld [vmem:[#allocation7 + $0xc] sm:$0xff]
    %v220 = vld [vmem:[#allocation7 + $0x14] sm:$0xf]
    %v221 = vld [vmem:[#allocation7 + $0x18] sm:$0xff]
    %v222 = vld [vmem:[#allocation7 + $0x20] sm:$0xf]
    %v223 = vld [vmem:[#allocation7 + $0x24] sm:$0xff]
    %v224 = vld [vmem:[#allocation7 + $0x2c] sm:$0xf]
    %v225 = vld [vmem:[#allocation7 + $0x30] sm:$0xff]
    %v226 = vld [vmem:[#allocation7 + $0x38] sm:$0xf]
    %v227 = vld [vmem:[#allocation7 + $0x3c] sm:$0xff]
    %v228 = vld [vmem:[#allocation7 + $0x44] sm:$0xf]
    %v229 = vld [vmem:[#allocation7 + $0x48] sm:$0xff]
    %v230 = vld [vmem:[#allocation7 + $0x50] sm:$0xf]
    %v231 = vld [vmem:[#allocation7 + $0x54] sm:$0xff]
    %v232 = vld [vmem:[#allocation7 + $0x5c] sm:$0xf]
    %v233 = vld [vmem:[#allocation7 + $0x60] sm:$0xff]
    %v234 = vld [vmem:[#allocation7 + $0x68] sm:$0xf]
    %v235 = vld [vmem:[#allocation7 + $0x6c] sm:$0xff]
    %v236 = vld [vmem:[#allocation7 + $0x74] sm:$0xf]
    %v237 = vld [vmem:[#allocation7 + $0x78] sm:$0xff]
    %v238 = vld [vmem:[#allocation7 + $0x80] sm:$0xf]
    %v239 = vld [vmem:[#allocation7 + $0x84] sm:$0xff]
    %v240 = vld [vmem:[#allocation7 + $0x8c] sm:$0xf]
    %v241 = vld [vmem:[#allocation7 + $0x90] sm:$0xff]
    %v242 = vld [vmem:[#allocation7 + $0x98] sm:$0xf]
    %v243 = vld [vmem:[#allocation7 + $0x9c] sm:$0xff]
    %v244 = vld [vmem:[#allocation7 + $0xa4] sm:$0xf]
    %v245 = vld [vmem:[#allocation7 + $0xa8] sm:$0xff]
    %v246 = vld [vmem:[#allocation7 + $0xb0] sm:$0xf]
    %v247 = vld [vmem:[#allocation7 + $0xb4] sm:$0xff]
    %v248 = vld [vmem:[#allocation7 + $0xbc] sm:$0xf]
    %v249 = vld [vmem:[%s4] sm:$0x7]
    %v251 = vlaneseq
    %v252 = vshrl.u32 %v251, 7
    %v253 = vsub.s32 0, %v252
    %v254 = vrot.slane %v249, %v253
    %v255 = vlaneseq
    %v256 = vshrl.u32 %v255, 7
    %v257 = vsub.s32 1, %v256
    %v258 = vrot.slane %v249, %v257
    %v259 = vlaneseq
    %v260 = vshrl.u32 %v259, 7
    %v261 = vsub.s32 2, %v260
    %v262 = vrot.slane %v249, %v261
    %v298 = vunpack.c.l.b16 %v217
    %v299 = vunpack.c.h.b16 %v217
    %v300 = vunpack.c.l.b16 %v218
    %v301 = vunpack.c.l.b16 %v219
    %v302 = vunpack.c.h.b16 %v219
    %v303 = vunpack.c.l.b16 %v220
    %v304 = vunpack.c.l.b16 %v221
    %v305 = vunpack.c.h.b16 %v221
    %v306 = vunpack.c.l.b16 %v222
    %v307 = vunpack.c.l.b16 %v223
    %v308 = vunpack.c.h.b16 %v223
    %v309 = vunpack.c.l.b16 %v224
    %v310 = vunpack.c.l.b16 %v225
    %v311 = vunpack.c.h.b16 %v225
    %v312 = vunpack.c.l.b16 %v226
    %v313 = vunpack.c.l.b16 %v227
    %v314 = vunpack.c.h.b16 %v227
    %v315 = vunpack.c.l.b16 %v228
    %v316 = vunpack.c.l.b16 %v229
    %v317 = vunpack.c.h.b16 %v229
    %v318 = vunpack.c.l.b16 %v230
    %v319 = vunpack.c.l.b16 %v231
    %v320 = vunpack.c.h.b16 %v231
    %v321 = vunpack.c.l.b16 %v232
    %v322 = vunpack.c.l.b16 %v233
    %v323 = vunpack.c.h.b16 %v233
    %v324 = vunpack.c.l.b16 %v234
    %v325 = vunpack.c.l.b16 %v235
    %v326 = vunpack.c.h.b16 %v235
    %v327 = vunpack.c.l.b16 %v236
    %v328 = vunpack.c.l.b16 %v237
    %v329 = vunpack.c.h.b16 %v237
    %v330 = vunpack.c.l.b16 %v238
    %v331 = vunpack.c.l.b16 %v239
    %v332 = vunpack.c.h.b16 %v239
    %v333 = vunpack.c.l.b16 %v240
    %v334 = vunpack.c.l.b16 %v241
    %v335 = vunpack.c.h.b16 %v241
    %v336 = vunpack.c.l.b16 %v242
    %v337 = vunpack.c.l.b16 %v243
    %v338 = vunpack.c.h.b16 %v243
    %v339 = vunpack.c.l.b16 %v244
    %v340 = vunpack.c.l.b16 %v245
    %v341 = vunpack.c.h.b16 %v245
    %v342 = vunpack.c.l.b16 %v246
    %v343 = vunpack.c.l.b16 %v247
    %v344 = vunpack.c.h.b16 %v247
    %v345 = vunpack.c.l.b16 %v248
    %v346 = vpack.c.b16 %v301, %v298
    %v347 = vpack.c.b16 %v302, %v299
    %v348 = vpack.c.b16 %v303, %v300
    %v349 = vpack.c.b16 %v307, %v304
    %v350 = vpack.c.b16 %v308, %v305
    %v351 = vpack.c.b16 %v309, %v306
    %v352 = vpack.c.b16 %v313, %v310
    %v353 = vpack.c.b16 %v314, %v311
    %v354 = vpack.c.b16 %v315, %v312
    %v355 = vpack.c.b16 %v319, %v316
    %v356 = vpack.c.b16 %v320, %v317
    %v357 = vpack.c.b16 %v321, %v318
    %v358 = vpack.c.b16 %v325, %v322
    %v359 = vpack.c.b16 %v326, %v323
    %v360 = vpack.c.b16 %v327, %v324
    %v361 = vpack.c.b16 %v331, %v328
    %v362 = vpack.c.b16 %v332, %v329
    %v363 = vpack.c.b16 %v333, %v330
    %v364 = vpack.c.b16 %v337, %v334
    %v365 = vpack.c.b16 %v338, %v335
    %v366 = vpack.c.b16 %v339, %v336
    %v367 = vpack.c.b16 %v343, %v340
    %v368 = vpack.c.b16 %v344, %v341
    %v369 = vpack.c.b16 %v345, %v342
    %394 = vmatprep.subr.bf16.mxu0 %v347
    %395 = vmatpush1.bf16.msra.mxu0 %v346
    %396 = vmatprep.subr.bf16.mxu0 %v350
    %397 = vmatpush1.bf16.msra.mxu0 %v349
    %398 = vmatprep.subr.bf16.mxu0 %v353
    %399 = vmatpush1.bf16.msra.mxu0 %v352
    %400 = vmatprep.subr.bf16.mxu0 %v356
    %401 = vmatpush1.bf16.msra.mxu0 %v355
    %402 = vmatprep.subr.bf16.mxu0 %v359
    %403 = vmatpush1.bf16.msra.mxu0 %v358
    %404 = vmatprep.subr.bf16.mxu0 %v362
    %405 = vmatpush1.bf16.msra.mxu0 %v361
    %406 = vmatprep.subr.bf16.mxu0 %v365
    %407 = vmatpush1.bf16.msra.mxu0 %v364
    %408 = vmatprep.subr.bf16.mxu0 %v368
    %409 = vmatpush1.bf16.msra.mxu0 %v367
    %410 = vmatprep.subr.bf16.mxu0 0
    %411 = vmatpush1.bf16.msra.mxu0 0
    %412 = vmatprep.subr.bf16.mxu0 0
    %413 = vmatpush1.bf16.msra.mxu0 0
    %414 = vmatprep.subr.bf16.mxu0 0
    %415 = vmatpush1.bf16.msra.mxu0 0
    %416 = vmatprep.subr.bf16.mxu0 0
    %417 = vmatpush1.bf16.msra.mxu0 0
    %418 = vmatprep.subr.bf16.mxu0 0
    %419 = vmatpush1.bf16.msra.mxu0 0
    %420 = vmatprep.subr.bf16.mxu0 0
    %421 = vmatpush1.bf16.msra.mxu0 0
    %422 = vmatprep.subr.bf16.mxu0 0
    %423 = vmatpush1.bf16.msra.mxu0 0
    %424 = vmatprep.subr.bf16.mxu0 0
    %425 = vmatpush1.bf16.msra.mxu0 0
    %426 = vmatprep.mubr.bf16.mxu0 0
    %427 = vmatmul.mubr.bf16.gmra.mrb[0].mxu0 %v216
    %v428 = vpop.f32.mrb[0].mxu0
    %v429 = vadd.f32 %v254, %v428
    %v430 = vpop.f32.mrb[0].mxu0
    %v431 = vadd.f32 %v258, %v430
    %v432 = vpop.f32.mrb[0].mxu0
    %v433 = vpop.f32.mrb[0].mxu0
    %434 = vdwg.mxu0
    %435 = vmatprep.subr.bf16.mxu0 0
    %436 = vmatpush1.bf16.msra.mxu0 %v348
    %437 = vmatprep.subr.bf16.mxu0 0
    %438 = vmatpush1.bf16.msra.mxu0 %v351
    %439 = vmatprep.subr.bf16.mxu0 0
    %440 = vmatpush1.bf16.msra.mxu0 %v354
    %441 = vmatprep.subr.bf16.mxu0 0
    %442 = vmatpush1.bf16.msra.mxu0 %v357
    %443 = vmatprep.subr.bf16.mxu0 0
    %444 = vmatpush1.bf16.msra.mxu0 %v360
    %445 = vmatprep.subr.bf16.mxu0 0
    %446 = vmatpush1.bf16.msra.mxu0 %v363
    %447 = vmatprep.subr.bf16.mxu0 0
    %448 = vmatpush1.bf16.msra.mxu0 %v366
    %449 = vmatprep.subr.bf16.mxu0 0
    %450 = vmatpush1.bf16.msra.mxu0 %v369
    %451 = vmatprep.subr.bf16.mxu0 0
    %452 = vmatpush1.bf16.msra.mxu0 0
    %453 = vmatprep.subr.bf16.mxu0 0
    %454 = vmatpush1.bf16.msra.mxu0 0
    %455 = vmatprep.subr.bf16.mxu0 0
    %456 = vmatpush1.bf16.msra.mxu0 0
    %457 = vmatprep.subr.bf16.mxu0 0
    %458 = vmatpush1.bf16.msra.mxu0 0
    %459 = vmatprep.subr.bf16.mxu0 0
    %460 = vmatpush1.bf16.msra.mxu0 0
    %461 = vmatprep.subr.bf16.mxu0 0
    %462 = vmatpush1.bf16.msra.mxu0 0
    %463 = vmatprep.subr.bf16.mxu0 0
    %464 = vmatpush1.bf16.msra.mxu0 0
    %465 = vmatprep.subr.bf16.mxu0 0
    %466 = vmatpush1.bf16.msra.mxu0 0
    %467 = vmatprep.mubr.bf16.mxu0 0
    %468 = vmatmul.mubr.bf16.gmra.mrb[0].mxu0 %v216
    %v469 = vpop.f32.mrb[0].mxu0
    %v470 = vadd.f32 %v262, %v469
    %v471 = vpop.f32.mrb[0].mxu0
    %v472 = vpop.f32.mrb[0].mxu0
    %v473 = vpop.f32.mrb[0].mxu0
    %474 = vdwg.mxu0
    %v475 = vmul.f32 %v429, 0.5
    %v476 = vtanh.pop %v475
    %v477 = vadd.f32 %v476, 1.0
    %v478 = vmul.f32 %v477, 0.5
    %v479 = vtanh.pop %v431
    %v480 = vmul.f32 %v470, 0.5
    %v481 = vtanh.pop %v480
    %v482 = vadd.f32 %v481, 1.0
    %v483 = vmul.f32 %v482, 0.5
    %v484 = vmul.f32 %v478, %v479
    %v485 = vtanh.pop %v484
    %v486 = vmul.f32 %v483, %v485
    %v487 = vpack.c.bf16 %v486, %v486
    %v488 = vld [vmem:[#allocation8] sm:$0xf]
    %v489 = vld [vmem:[#allocation8 + $0x4] sm:$0xf]
    %v490 = vld [vmem:[#allocation8 + $0x8] sm:$0xf]
    %v491 = vld [vmem:[#allocation8 + $0xc] sm:$0xf]
    %v492 = vld [vmem:[#allocation8 + $0x10] sm:$0xf]
    %v493 = vld [vmem:[#allocation8 + $0x14] sm:$0xf]
    %v494 = vld [vmem:[#allocation8 + $0x18] sm:$0xf]
    %v495 = vld [vmem:[#allocation8 + $0x1c] sm:$0xf]
    %v496 = vld [vmem:[#allocation8 + $0x20] sm:$0xf]
    %v497 = vld [vmem:[#allocation8 + $0x24] sm:$0xf]
    %v498 = vld [vmem:[#allocation8 + $0x28] sm:$0xf]
    %v499 = vld [vmem:[#allocation8 + $0x2c] sm:$0xf]
    %v500 = vld [vmem:[#allocation8 + $0x30] sm:$0xf]
    %v501 = vld [vmem:[#allocation8 + $0x34] sm:$0xf]
    %v502 = vld [vmem:[#allocation8 + $0x38] sm:$0xf]
    %v503 = vld [vmem:[#allocation8 + $0x3c] sm:$0xf]
    %v504 = vld [vmem:[%s6] sm:$0x1]
    %v506 = vlaneseq
    %v507 = vshrl.u32 %v506, 7
    %v508 = vsub.s32 0, %v507
    %v509 = vrot.slane %v504, %v508
    %v527 = vunpack.c.l.b16 %v488
    %v528 = vunpack.c.l.b16 %v489
    %v529 = vunpack.c.l.b16 %v490
    %v530 = vunpack.c.l.b16 %v491
    %v531 = vunpack.c.l.b16 %v492
    %v532 = vunpack.c.l.b16 %v493
    %v533 = vunpack.c.l.b16 %v494
    %v534 = vunpack.c.l.b16 %v495
    %v535 = vunpack.c.l.b16 %v496
    %v536 = vunpack.c.l.b16 %v497
    %v537 = vunpack.c.l.b16 %v498
    %v538 = vunpack.c.l.b16 %v499
    %v539 = vunpack.c.l.b16 %v500
    %v540 = vunpack.c.l.b16 %v501
    %v541 = vunpack.c.l.b16 %v502
    %v542 = vunpack.c.l.b16 %v503
    %v543 = vpack.c.b16 %v528, %v527
    %v544 = vpack.c.b16 %v530, %v529
    %v545 = vpack.c.b16 %v532, %v531
    %v546 = vpack.c.b16 %v534, %v533
    %v547 = vpack.c.b16 %v536, %v535
    %v548 = vpack.c.b16 %v538, %v537
    %v549 = vpack.c.b16 %v540, %v539
    %v550 = vpack.c.b16 %v542, %v541
    %559 = vmatprep.subr.bf16.mxu0 0
    %560 = vmatpush1.bf16.msra.mxu0 %v543
    %561 = vmatprep.subr.bf16.mxu0 0
    %562 = vmatpush1.bf16.msra.mxu0 %v544
    %563 = vmatprep.subr.bf16.mxu0 0
    %564 = vmatpush1.bf16.msra.mxu0 %v545
    %565 = vmatprep.subr.bf16.mxu0 0
    %566 = vmatpush1.bf16.msra.mxu0 %v546
    %567 = vmatprep.subr.bf16.mxu0 0
    %568 = vmatpush1.bf16.msra.mxu0 %v547
    %569 = vmatprep.subr.bf16.mxu0 0
    %570 = vmatpush1.bf16.msra.mxu0 %v548
    %571 = vmatprep.subr.bf16.mxu0 0
    %572 = vmatpush1.bf16.msra.mxu0 %v549
    %573 = vmatprep.subr.bf16.mxu0 0
    %574 = vmatpush1.bf16.msra.mxu0 %v550
    %575 = vmatprep.subr.bf16.mxu0 0
    %576 = vmatpush1.bf16.msra.mxu0 0
    %577 = vmatprep.subr.bf16.mxu0 0
    %578 = vmatpush1.bf16.msra.mxu0 0
    %579 = vmatprep.subr.bf16.mxu0 0
    %580 = vmatpush1.bf16.msra.mxu0 0
    %581 = vmatprep.subr.bf16.mxu0 0
    %582 = vmatpush1.bf16.msra.mxu0 0
    %583 = vmatprep.subr.bf16.mxu0 0
    %584 = vmatpush1.bf16.msra.mxu0 0
    %585 = vmatprep.subr.bf16.mxu0 0
    %586 = vmatpush1.bf16.msra.mxu0 0
    %587 = vmatprep.subr.bf16.mxu0 0
    %588 = vmatpush1.bf16.msra.mxu0 0
    %589 = vmatprep.subr.bf16.mxu0 0
    %590 = vmatpush1.bf16.msra.mxu0 0
    %591 = vmatprep.mubr.bf16.mxu0 0
    %592 = vmatmul.mubr.bf16.gmra.mrb[0].mxu0 %v487
    %v593 = vpop.f32.mrb[0].mxu0
    %v594 = vadd.f32 %v509, %v593
    %v595 = vpop.f32.mrb[0].mxu0
    %v596 = vpop.f32.mrb[0].mxu0
    %v597 = vpop.f32.mrb[0].mxu0
    %598 = vdwg.mxu0
    %599 = vst [vmem:[#allocation10] sm:$0xff] %v594
    // Predicated region
    $region46: #{tpu_custom_call.1} parent=1 // pred_check
      _
    $region47: #{tpu_custom_call.1} parent=1 // pred_check_branch
      %601 = sbr.rel (0) target = $region49
    $region48: #{tpu_custom_call.1} parent=1 // pred_region
      %s603 = ssub.s32 128, 128
      %604 = vsyncadd [#allocation4], %s603
      %s606 = sshll.u32 [#allocation10], 4
      %s607 = int_to_ptr.vmem [resolvable:$true] %s606
      %609 = dma.vmem_to_hbm [thread:$0]  %s607, 128, %s7, [#allocation4]
    $region49: #{tpu_custom_call.1} parent=1 // pred_fallthru
      _
    // Predicated region
    $region50: #{tpu_custom_call.1} parent=1 // pred_check
      _
    $region51: #{tpu_custom_call.1} parent=1 // pred_check_branch
      %611 = sbr.rel (0) target = $region53
    $region52: #{tpu_custom_call.1} parent=1 // pred_region
      %612 = dma.done [#allocation4], 128
    $region53: #{tpu_custom_call.1} parent=1 // pred_fallthru
      _
    %613 = vsyncpa [#allocation3], 1
    %614 = vsyncpa [#allocation6], 1
    %615 = vsyncpa [#allocation9], 1
    %616 = vsyncpa [#allocation4], 1

// kernel: tpu_custom_call.1
$region0: #{tpu_custom_call.1}
  #allocation0 [shape = 'u32[]', space=smem, size = 0x4, offset = 0x4, fixed_abs, tag = 'smem constant byte address 0x4 - core index']
  #allocation1 [shape = 'u32[144,128]{1,0:T(1,128)}', space=vmem, size = 0x12000, scoped, tag = 'internal scratch']
  %s0 = inlined_call_operand.hbm [shape: bf16[8,16], index: 0, kind: input, shape index: {}]
  %s1 = inlined_call_operand.hbm [shape: bf16[16,384], index: 1, kind: input, shape index: {}]
  %s2 = inlined_call_operand.vmem [shape: f32[1,384], index: 2, kind: input, shape index: {}]
  %s3 = inlined_call_operand.hbm [shape: bf16[128,384], index: 3, kind: input, shape index: {}]
  %s4 = inlined_call_operand.vmem [shape: f32[1,384], index: 4, kind: input, shape index: {}]
  %s5 = inlined_call_operand.hbm [shape: bf16[128,128], index: 5, kind: input, shape index: {}]
  %s6 = inlined_call_operand.vmem [shape: f32[1,128], index: 6, kind: input, shape index: {}]
  %s7 = inlined_call_operand.hbm [shape: f32[8,128], index: 7, kind: output, shape index: {}]
  %s8 = sld [smem:[#allocation0]]
  $region54: #{tpu_custom_call.1} parent=0
    _
  %s10 = ssub.s32 1, %s8
  %s11 = scalar_select 0, %s10, %s8
  $region1: #{tpu_custom_call.1} parent=0
    #allocation2 [shape = 'u8[2048]{0}', space=vmem, size = 0x800, scoped, tag = 'input window, operand 0, single buffered']
    #allocation3 [shape = 's32[1]{0}', space=sflag, size = 0x4, scoped, tag = 'scoped memory for tpu_custom_call.1']
    #allocation4 [shape = 's32[1]{0}', space=sflag, size = 0x4, scoped, tag = 'scoped memory for tpu_custom_call.1']
    #allocation5 [shape = 'u8[12288]{0}', space=vmem, size = 0x3000, scoped, tag = 'input window, operand 1, single buffered']
    #allocation6 [shape = 's32[1]{0}', space=sflag, size = 0x4, scoped, tag = 'scoped memory for tpu_custom_call.1']
    #allocation7 [shape = 'u8[98304]{0}', space=vmem, size = 0x18000, scoped, tag = 'input window, operand 3, single buffered']
    #allocation8 [shape = 'u8[32768]{0}', space=vmem, size = 0x8000, scoped, tag = 'input window, operand 5, single buffered']
    #allocation9 [shape = 's32[1]{0}', space=sflag, size = 0x4, scoped, tag = 'scoped memory for tpu_custom_call.1']
    #allocation10 [shape = 'u8[4096]{0}', space=vmem, size = 0x1000, scoped, tag = 'output window, operand 0, single buffered']
    %12 = vsyncpa [#allocation3], 0
    %13 = vsyncpa [#allocation6], 0
    %14 = vsyncpa [#allocation9], 0
    %15 = vsyncpa [#allocation4], 0
    // Predicated region
    $region2: #{tpu_custom_call.1} parent=1 // pred_check
      _
    $region3: #{tpu_custom_call.1} parent=1 // pred_check_branch
      %17 = sbr.rel (0) target = $region5
    $region4: #{tpu_custom_call.1} parent=1 // pred_region
      %s19 = ssub.s32 64, 64
      %20 = vsyncadd [#allocation3], %s19
      %s22 = sshll.u32 [#allocation2], 4
      %s23 = int_to_ptr.vmem [resolvable:$true] %s22
      %25 = dma.hbm_to_vmem [thread:$0]  %s0, 64, %s23, [#allocation3]
    $region5: #{tpu_custom_call.1} parent=1 // pred_fallthru
      _
    // Predicated region
    $region6: #{tpu_custom_call.1} parent=1 // pred_check
      _
    $region7: #{tpu_custom_call.1} parent=1 // pred_check_branch
      %27 = sbr.rel (0) target = $region9
    $region8: #{tpu_custom_call.1} parent=1 // pred_region
      %s29 = ssub.s32 384, 384
      %30 = vsyncadd [#allocation6], %s29
      %s31 = sshll.u32 [#allocation5], 4
      %s32 = int_to_ptr.vmem [resolvable:$true] %s31
      %37 = dma.hbm_to_vmem [thread:$0]  %s1, 384, %s32, [#allocation6], 192, 192, 12
    $region9: #{tpu_custom_call.1} parent=1 // pred_fallthru
      _
    // Predicated region
    $region10: #{tpu_custom_call.1} parent=1 // pred_check
      _
    $region11: #{tpu_custom_call.1} parent=1 // pred_check_branch
      %39 = sbr.rel (0) target = $region13
    $region12: #{tpu_custom_call.1} parent=1 // pred_region
      _
    $region13: #{tpu_custom_call.1} parent=1 // pred_fallthru
      _
    // Predicated region
    $region14: #{tpu_custom_call.1} parent=1 // pred_check
      _
    $region15: #{tpu_custom_call.1} parent=1 // pred_check_branch
      %41 = sbr.rel (0) target = $region17
    $region16: #{tpu_custom_call.1} parent=1 // pred_region
      %s43 = ssub.s32 3072, 3072
      %44 = vsyncadd [#allocation6], %s43
      %s45 = sshll.u32 [#allocation7], 4
      %s46 = int_to_ptr.vmem [resolvable:$true] %s45
      %51 = dma.hbm_to_vmem [thread:$0]  %s3, 3072, %s46, [#allocation6], 192, 192, 12
    $region17: #{tpu_custom_call.1} parent=1 // pred_fallthru
      _
    // Predicated region
    $region18: #{tpu_custom_call.1} parent=1 // pred_check
      _
    $region19: #{tpu_custom_call.1} parent=1 // pred_check_branch
      %53 = sbr.rel (0) target = $region21
    $region20: #{tpu_custom_call.1} parent=1 // pred_region
      _
    $region21: #{tpu_custom_call.1} parent=1 // pred_fallthru
      _
    // Predicated region
    $region22: #{tpu_custom_call.1} parent=1 // pred_check
      _
    $region23: #{tpu_custom_call.1} parent=1 // pred_check_branch
      %55 = sbr.rel (0) target = $region25
    $region24: #{tpu_custom_call.1} parent=1 // pred_region
      %s57 = ssub.s32 1024, 1024
      %58 = vsyncadd [#allocation9], %s57
      %s59 = sshll.u32 [#allocation8], 4
      %s60 = int_to_ptr.vmem [resolvable:$true] %s59
      %65 = dma.hbm_to_vmem [thread:$0]  %s5, 1024, %s60, [#allocation9], 64, 64, 4
    $region25: #{tpu_custom_call.1} parent=1 // pred_fallthru
      _
    // Predicated region
    $region26: #{tpu_custom_call.1} parent=1 // pred_check
      _
    $region27: #{tpu_custom_call.1} parent=1 // pred_check_branch
      %67 = sbr.rel (0) target = $region29
    $region28: #{tpu_custom_call.1} parent=1 // pred_region
      _
    $region29: #{tpu_custom_call.1} parent=1 // pred_fallthru
      _
    // Predicated region
    $region30: #{tpu_custom_call.1} parent=1 // pred_check
      _
    $region31: #{tpu_custom_call.1} parent=1 // pred_check_branch
      %69 = sbr.rel (0) target = $region33
    $region32: #{tpu_custom_call.1} parent=1 // pred_region
      %70 = dma.done [#allocation3], 64
    $region33: #{tpu_custom_call.1} parent=1 // pred_fallthru
      _
    // Predicated region
    $region34: #{tpu_custom_call.1} parent=1 // pred_check
      _
    $region35: #{tpu_custom_call.1} parent=1 // pred_check_branch
      %72 = sbr.rel (0) target = $region37
    $region36: #{tpu_custom_call.1} parent=1 // pred_region
      %73 = dma.done [#allocation6], 384
    $region37: #{tpu_custom_call.1} parent=1 // pred_fallthru
      _
    // Predicated region
    $region38: #{tpu_custom_call.1} parent=1 // pred_check
      _
    $region39: #{tpu_custom_call.1} parent=1 // pred_check_branch
      %75 = sbr.rel (0) target = $region41
    $region40: #{tpu_custom_call.1} parent=1 // pred_region
      %76 = dma.done [#allocation6], 3072
    $region41: #{tpu_custom_call.1} parent=1 // pred_fallthru
      _
    // Predicated region
    $region42: #{tpu_custom_call.1} parent=1 // pred_check
      _
    $region43: #{tpu_custom_call.1} parent=1 // pred_check_branch
      %78 = sbr.rel (0) target = $region45
    $region44: #{tpu_custom_call.1} parent=1 // pred_region
      %79 = dma.done [#allocation9], 1024
    $region45: #{tpu_custom_call.1} parent=1 // pred_fallthru
      _
    %v81 = vld [vmem:[#allocation2] sm:$0xf]
    %v82 = vld [vmem:[#allocation5] sm:$0xff]
    %v83 = vld [vmem:[#allocation5 + $0x8] sm:$0xf]
    %v84 = vld [vmem:[#allocation5 + $0xc] sm:$0xff]
    %v85 = vld [vmem:[#allocation5 + $0x14] sm:$0xf]
    %v86 = vld [vmem:[%s2] sm:$0x7]
    %v88 = vlaneseq
    %v89 = vshrl.u32 %v88, 7
    %v90 = vsub.s32 0, %v89
    %v91 = vrot.slane %v86, %v90
    %v92 = vlaneseq
    %v93 = vshrl.u32 %v92, 7
    %v94 = vsub.s32 1, %v93
    %v95 = vrot.slane %v86, %v94
    %v96 = vlaneseq
    %v97 = vshrl.u32 %v96, 7
    %v98 = vsub.s32 2, %v97
    %v99 = vrot.slane %v86, %v98
    %v107 = vunpack.c.l.b16 %v82
    %v108 = vunpack.c.h.b16 %v82
    %v109 = vunpack.c.l.b16 %v83
    %v110 = vunpack.c.l.b16 %v84
    %v111 = vunpack.c.h.b16 %v84
    %v112 = vunpack.c.l.b16 %v85
    %v113 = vpack.c.b16 %v110, %v107
    %v114 = vpack.c.b16 %v111, %v108
    %v115 = vpack.c.b16 %v112, %v109
    %vm119 = vcmask 130048
    %v121 = vsel %vm119, %v81, 0
    %123 = vmatprep.subr.bf16.mxu0 %v114
    %124 = vmatpush1.bf16.msra.mxu0 %v113
    %125 = vmatprep.subr.bf16.mxu0 0
    %126 = vmatpush1.bf16.msra.mxu0 0
    %127 = vmatprep.subr.bf16.mxu0 0
    %128 = vmatpush1.bf16.msra.mxu0 0
    %129 = vmatprep.subr.bf16.mxu0 0
    %130 = vmatpush1.bf16.msra.mxu0 0
    %131 = vmatprep.subr.bf16.mxu0 0
    %132 = vmatpush1.bf16.msra.mxu0 0
    %133 = vmatprep.subr.bf16.mxu0 0
    %134 = vmatpush1.bf16.msra.mxu0 0
    %135 = vmatprep.subr.bf16.mxu0 0
    %136 = vmatpush1.bf16.msra.mxu0 0
    %137 = vmatprep.subr.bf16.mxu0 0
    %138 = vmatpush1.bf16.msra.mxu0 0
    %139 = vmatprep.subr.bf16.mxu0 0
    %140 = vmatpush1.bf16.msra.mxu0 0
    %141 = vmatprep.subr.bf16.mxu0 0
    %142 = vmatpush1.bf16.msra.mxu0 0
    %143 = vmatprep.subr.bf16.mxu0 0
    %144 = vmatpush1.bf16.msra.mxu0 0
    %145 = vmatprep.subr.bf16.mxu0 0
    %146 = vmatpush1.bf16.msra.mxu0 0
    %147 = vmatprep.subr.bf16.mxu0 0
    %148 = vmatpush1.bf16.msra.mxu0 0
    %149 = vmatprep.subr.bf16.mxu0 0
    %150 = vmatpush1.bf16.msra.mxu0 0
    %151 = vmatprep.subr.bf16.mxu0 0
    %152 = vmatpush1.bf16.msra.mxu0 0
    %153 = vmatprep.subr.bf16.mxu0 0
    %154 = vmatpush1.bf16.msra.mxu0 0
    %155 = vmatprep.mubr.bf16.mxu0 0
    %156 = vmatmul.mubr.bf16.gmra.mrb[0].mxu0 %v121
    %v157 = vpop.f32.mrb[0].mxu0
    %v158 = vadd.f32 %v91, %v157
    %v159 = vpop.f32.mrb[0].mxu0
    %v160 = vadd.f32 %v95, %v159
    %v161 = vpop.f32.mrb[0].mxu0
    %v162 = vpop.f32.mrb[0].mxu0
    %163 = vdwg.mxu0
    %164 = vmatprep.subr.bf16.mxu0 0
    %165 = vmatpush1.bf16.msra.mxu0 %v115
    %166 = vmatprep.subr.bf16.mxu0 0
    %167 = vmatpush1.bf16.msra.mxu0 0
    %168 = vmatprep.subr.bf16.mxu0 0
    %169 = vmatpush1.bf16.msra.mxu0 0
    %170 = vmatprep.subr.bf16.mxu0 0
    %171 = vmatpush1.bf16.msra.mxu0 0
    %172 = vmatprep.subr.bf16.mxu0 0
    %173 = vmatpush1.bf16.msra.mxu0 0
    %174 = vmatprep.subr.bf16.mxu0 0
    %175 = vmatpush1.bf16.msra.mxu0 0
    %176 = vmatprep.subr.bf16.mxu0 0
    %177 = vmatpush1.bf16.msra.mxu0 0
    %178 = vmatprep.subr.bf16.mxu0 0
    %179 = vmatpush1.bf16.msra.mxu0 0
    %180 = vmatprep.subr.bf16.mxu0 0
    %181 = vmatpush1.bf16.msra.mxu0 0
    %182 = vmatprep.subr.bf16.mxu0 0
    %183 = vmatpush1.bf16.msra.mxu0 0
    %184 = vmatprep.subr.bf16.mxu0 0
    %185 = vmatpush1.bf16.msra.mxu0 0
    %186 = vmatprep.subr.bf16.mxu0 0
    %187 = vmatpush1.bf16.msra.mxu0 0
    %188 = vmatprep.subr.bf16.mxu0 0
    %189 = vmatpush1.bf16.msra.mxu0 0
    %190 = vmatprep.subr.bf16.mxu0 0
    %191 = vmatpush1.bf16.msra.mxu0 0
    %192 = vmatprep.subr.bf16.mxu0 0
    %193 = vmatpush1.bf16.msra.mxu0 0
    %194 = vmatprep.subr.bf16.mxu0 0
    %195 = vmatpush1.bf16.msra.mxu0 0
    %196 = vmatprep.mubr.bf16.mxu0 0
    %197 = vmatmul.mubr.bf16.gmra.mrb[0].mxu0 %v121
    %v198 = vpop.f32.mrb[0].mxu0
    %v199 = vadd.f32 %v99, %v198
    %v200 = vpop.f32.mrb[0].mxu0
    %v201 = vpop.f32.mrb[0].mxu0
    %v202 = vpop.f32.mrb[0].mxu0
    %203 = vdwg.mxu0
    %v204 = vmul.f32 %v158, 0.5
    %v205 = vtanh.pop %v204
    %v206 = vadd.f32 %v205, 1.0
    %v207 = vmul.f32 %v206, 0.5
    %v208 = vtanh.pop %v160
    %v209 = vmul.f32 %v199, 0.5
    %v210 = vtanh.pop %v209
    %v211 = vadd.f32 %v210, 1.0
    %v212 = vmul.f32 %v211, 0.5
    %v213 = vmul.f32 %v207, %v208
    %v214 = vtanh.pop %v213
    %v215 = vmul.f32 %v212, %v214
    %v216 = vpack.c.bf16 %v215, %v215
    %v217 = vld [vmem:[#allocation7] sm:$0xff]
    %v218 = vld [vmem:[#allocation7 + $0x8] sm:$0xf]
    %v219 = vld [vmem:[#allocation7 + $0xc] sm:$0xff]
    %v220 = vld [vmem:[#allocation7 + $0x14] sm:$0xf]
    %v221 = vld [vmem:[#allocation7 + $0x18] sm:$0xff]
    %v222 = vld [vmem:[#allocation7 + $0x20] sm:$0xf]
    %v223 = vld [vmem:[#allocation7 + $0x24] sm:$0xff]
    %v224 = vld [vmem:[#allocation7 + $0x2c] sm:$0xf]
    %v225 = vld [vmem:[#allocation7 + $0x30] sm:$0xff]
    %v226 = vld [vmem:[#allocation7 + $0x38] sm:$0xf]
    %v227 = vld [vmem:[#allocation7 + $0x3c] sm:$0xff]
    %v228 = vld [vmem:[#allocation7 + $0x44] sm:$0xf]
    %v229 = vld [vmem:[#allocation7 + $0x48] sm:$0xff]
    %v230 = vld [vmem:[#allocation7 + $0x50] sm:$0xf]
    %v231 = vld [vmem:[#allocation7 + $0x54] sm:$0xff]
    %v232 = vld [vmem:[#allocation7 + $0x5c] sm:$0xf]
    %v233 = vld [vmem:[#allocation7 + $0x60] sm:$0xff]
    %v234 = vld [vmem:[#allocation7 + $0x68] sm:$0xf]
    %v235 = vld [vmem:[#allocation7 + $0x6c] sm:$0xff]
    %v236 = vld [vmem:[#allocation7 + $0x74] sm:$0xf]
    %v237 = vld [vmem:[#allocation7 + $0x78] sm:$0xff]
    %v238 = vld [vmem:[#allocation7 + $0x80] sm:$0xf]
    %v239 = vld [vmem:[#allocation7 + $0x84] sm:$0xff]
    %v240 = vld [vmem:[#allocation7 + $0x8c] sm:$0xf]
    %v241 = vld [vmem:[#allocation7 + $0x90] sm:$0xff]
    %v242 = vld [vmem:[#allocation7 + $0x98] sm:$0xf]
    %v243 = vld [vmem:[#allocation7 + $0x9c] sm:$0xff]
    %v244 = vld [vmem:[#allocation7 + $0xa4] sm:$0xf]
    %v245 = vld [vmem:[#allocation7 + $0xa8] sm:$0xff]
    %v246 = vld [vmem:[#allocation7 + $0xb0] sm:$0xf]
    %v247 = vld [vmem:[#allocation7 + $0xb4] sm:$0xff]
    %v248 = vld [vmem:[#allocation7 + $0xbc] sm:$0xf]
    %v249 = vld [vmem:[%s4] sm:$0x7]
    %v251 = vlaneseq
    %v252 = vshrl.u32 %v251, 7
    %v253 = vsub.s32 0, %v252
    %v254 = vrot.slane %v249, %v253
    %v255 = vlaneseq
    %v256 = vshrl.u32 %v255, 7
    %v257 = vsub.s32 1, %v256
    %v258 = vrot.slane %v249, %v257
    %v259 = vlaneseq
    %v260 = vshrl.u32 %v259, 7
    %v261 = vsub.s32 2, %v260
    %v262 = vrot.slane %v249, %v261
    %v298 = vunpack.c.l.b16 %v217
    %v299 = vunpack.c.h.b16 %v217
    %v300 = vunpack.c.l.b16 %v218
    %v301 = vunpack.c.l.b16 %v219
    %v302 = vunpack.c.h.b16 %v219
    %v303 = vunpack.c.l.b16 %v220
    %v304 = vunpack.c.l.b16 %v221
    %v305 = vunpack.c.h.b16 %v221
    %v306 = vunpack.c.l.b16 %v222
    %v307 = vunpack.c.l.b16 %v223
    %v308 = vunpack.c.h.b16 %v223
    %v309 = vunpack.c.l.b16 %v224
    %v310 = vunpack.c.l.b16 %v225
    %v311 = vunpack.c.h.b16 %v225
    %v312 = vunpack.c.l.b16 %v226
    %v313 = vunpack.c.l.b16 %v227
    %v314 = vunpack.c.h.b16 %v227
    %v315 = vunpack.c.l.b16 %v228
    %v316 = vunpack.c.l.b16 %v229
    %v317 = vunpack.c.h.b16 %v229
    %v318 = vunpack.c.l.b16 %v230
    %v319 = vunpack.c.l.b16 %v231
    %v320 = vunpack.c.h.b16 %v231
    %v321 = vunpack.c.l.b16 %v232
    %v322 = vunpack.c.l.b16 %v233
    %v323 = vunpack.c.h.b16 %v233
    %v324 = vunpack.c.l.b16 %v234
    %v325 = vunpack.c.l.b16 %v235
    %v326 = vunpack.c.h.b16 %v235
    %v327 = vunpack.c.l.b16 %v236
    %v328 = vunpack.c.l.b16 %v237
    %v329 = vunpack.c.h.b16 %v237
    %v330 = vunpack.c.l.b16 %v238
    %v331 = vunpack.c.l.b16 %v239
    %v332 = vunpack.c.h.b16 %v239
    %v333 = vunpack.c.l.b16 %v240
    %v334 = vunpack.c.l.b16 %v241
    %v335 = vunpack.c.h.b16 %v241
    %v336 = vunpack.c.l.b16 %v242
    %v337 = vunpack.c.l.b16 %v243
    %v338 = vunpack.c.h.b16 %v243
    %v339 = vunpack.c.l.b16 %v244
    %v340 = vunpack.c.l.b16 %v245
    %v341 = vunpack.c.h.b16 %v245
    %v342 = vunpack.c.l.b16 %v246
    %v343 = vunpack.c.l.b16 %v247
    %v344 = vunpack.c.h.b16 %v247
    %v345 = vunpack.c.l.b16 %v248
    %v346 = vpack.c.b16 %v301, %v298
    %v347 = vpack.c.b16 %v302, %v299
    %v348 = vpack.c.b16 %v303, %v300
    %v349 = vpack.c.b16 %v307, %v304
    %v350 = vpack.c.b16 %v308, %v305
    %v351 = vpack.c.b16 %v309, %v306
    %v352 = vpack.c.b16 %v313, %v310
    %v353 = vpack.c.b16 %v314, %v311
    %v354 = vpack.c.b16 %v315, %v312
    %v355 = vpack.c.b16 %v319, %v316
    %v356 = vpack.c.b16 %v320, %v317
    %v357 = vpack.c.b16 %v321, %v318
    %v358 = vpack.c.b16 %v325, %v322
    %v359 = vpack.c.b16 %v326, %v323
    %v360 = vpack.c.b16 %v327, %v324
    %v361 = vpack.c.b16 %v331, %v328
    %v362 = vpack.c.b16 %v332, %v329
    %v363 = vpack.c.b16 %v333, %v330
    %v364 = vpack.c.b16 %v337, %v334
    %v365 = vpack.c.b16 %v338, %v335
    %v366 = vpack.c.b16 %v339, %v336
    %v367 = vpack.c.b16 %v343, %v340
    %v368 = vpack.c.b16 %v344, %v341
    %v369 = vpack.c.b16 %v345, %v342
    %394 = vmatprep.subr.bf16.mxu0 %v347
    %395 = vmatpush1.bf16.msra.mxu0 %v346
    %396 = vmatprep.subr.bf16.mxu0 %v350
    %397 = vmatpush1.bf16.msra.mxu0 %v349
    %398 = vmatprep.subr.bf16.mxu0 %v353
    %399 = vmatpush1.bf16.msra.mxu0 %v352
    %400 = vmatprep.subr.bf16.mxu0 %v356
    %401 = vmatpush1.bf16.msra.mxu0 %v355
    %402 = vmatprep.subr.bf16.mxu0 %v359
    %403 = vmatpush1.bf16.msra.mxu0 %v358
    %404 = vmatprep.subr.bf16.mxu0 %v362
    %405 = vmatpush1.bf16.msra.mxu0 %v361
    %406 = vmatprep.subr.bf16.mxu0 %v365
    %407 = vmatpush1.bf16.msra.mxu0 %v364
    %408 = vmatprep.subr.bf16.mxu0 %v368
    %409 = vmatpush1.bf16.msra.mxu0 %v367
    %410 = vmatprep.subr.bf16.mxu0 0
    %411 = vmatpush1.bf16.msra.mxu0 0
    %412 = vmatprep.subr.bf16.mxu0 0
    %413 = vmatpush1.bf16.msra.mxu0 0
    %414 = vmatprep.subr.bf16.mxu0 0
    %415 = vmatpush1.bf16.msra.mxu0 0
    %416 = vmatprep.subr.bf16.mxu0 0
    %417 = vmatpush1.bf16.msra.mxu0 0
    %418 = vmatprep.subr.bf16.mxu0 0
    %419 = vmatpush1.bf16.msra.mxu0 0
    %420 = vmatprep.subr.bf16.mxu0 0
    %421 = vmatpush1.bf16.msra.mxu0 0
    %422 = vmatprep.subr.bf16.mxu0 0
    %423 = vmatpush1.bf16.msra.mxu0 0
    %424 = vmatprep.subr.bf16.mxu0 0
    %425 = vmatpush1.bf16.msra.mxu0 0
    %426 = vmatprep.mubr.bf16.mxu0 0
    %427 = vmatmul.mubr.bf16.gmra.mrb[0].mxu0 %v216
    %v428 = vpop.f32.mrb[0].mxu0
    %v429 = vadd.f32 %v254, %v428
    %v430 = vpop.f32.mrb[0].mxu0
    %v431 = vadd.f32 %v258, %v430
    %v432 = vpop.f32.mrb[0].mxu0
    %v433 = vpop.f32.mrb[0].mxu0
    %434 = vdwg.mxu0
    %435 = vmatprep.subr.bf16.mxu0 0
    %436 = vmatpush1.bf16.msra.mxu0 %v348
    %437 = vmatprep.subr.bf16.mxu0 0
    %438 = vmatpush1.bf16.msra.mxu0 %v351
    %439 = vmatprep.subr.bf16.mxu0 0
    %440 = vmatpush1.bf16.msra.mxu0 %v354
    %441 = vmatprep.subr.bf16.mxu0 0
    %442 = vmatpush1.bf16.msra.mxu0 %v357
    %443 = vmatprep.subr.bf16.mxu0 0
    %444 = vmatpush1.bf16.msra.mxu0 %v360
    %445 = vmatprep.subr.bf16.mxu0 0
    %446 = vmatpush1.bf16.msra.mxu0 %v363
    %447 = vmatprep.subr.bf16.mxu0 0
    %448 = vmatpush1.bf16.msra.mxu0 %v366
    %449 = vmatprep.subr.bf16.mxu0 0
    %450 = vmatpush1.bf16.msra.mxu0 %v369
    %451 = vmatprep.subr.bf16.mxu0 0
    %452 = vmatpush1.bf16.msra.mxu0 0
    %453 = vmatprep.subr.bf16.mxu0 0
    %454 = vmatpush1.bf16.msra.mxu0 0
    %455 = vmatprep.subr.bf16.mxu0 0
    %456 = vmatpush1.bf16.msra.mxu0 0
    %457 = vmatprep.subr.bf16.mxu0 0
    %458 = vmatpush1.bf16.msra.mxu0 0
    %459 = vmatprep.subr.bf16.mxu0 0
    %460 = vmatpush1.bf16.msra.mxu0 0
    %461 = vmatprep.subr.bf16.mxu0 0
    %462 = vmatpush1.bf16.msra.mxu0 0
    %463 = vmatprep.subr.bf16.mxu0 0
    %464 = vmatpush1.bf16.msra.mxu0 0
    %465 = vmatprep.subr.bf16.mxu0 0
    %466 = vmatpush1.bf16.msra.mxu0 0
    %467 = vmatprep.mubr.bf16.mxu0 0
    %468 = vmatmul.mubr.bf16.gmra.mrb[0].mxu0 %v216
    %v469 = vpop.f32.mrb[0].mxu0
    %v470 = vadd.f32 %v262, %v469
    %v471 = vpop.f32.mrb[0].mxu0
    %v472 = vpop.f32.mrb[0].mxu0
    %v473 = vpop.f32.mrb[0].mxu0
    %474 = vdwg.mxu0
    %v475 = vmul.f32 %v429, 0.5
    %v476 = vtanh.pop %v475
    %v477 = vadd.f32 %v476, 1.0
    %v478 = vmul.f32 %v477, 0.5
    %v479 = vtanh.pop %v431
    %v480 = vmul.f32 %v470, 0.5
    %v481 = vtanh.pop %v480
    %v482 = vadd.f32 %v481, 1.0
    %v483 = vmul.f32 %v482, 0.5
    %v484 = vmul.f32 %v478, %v479
    %v485 = vtanh.pop %v484
    %v486 = vmul.f32 %v483, %v485
    %v487 = vpack.c.bf16 %v486, %v486
    %v488 = vld [vmem:[#allocation8] sm:$0xf]
    %v489 = vld [vmem:[#allocation8 + $0x4] sm:$0xf]
    %v490 = vld [vmem:[#allocation8 + $0x8] sm:$0xf]
    %v491 = vld [vmem:[#allocation8 + $0xc] sm:$0xf]
    %v492 = vld [vmem:[#allocation8 + $0x10] sm:$0xf]
    %v493 = vld [vmem:[#allocation8 + $0x14] sm:$0xf]
    %v494 = vld [vmem:[#allocation8 + $0x18] sm:$0xf]
    %v495 = vld [vmem:[#allocation8 + $0x1c] sm:$0xf]
    %v496 = vld [vmem:[#allocation8 + $0x20] sm:$0xf]
    %v497 = vld [vmem:[#allocation8 + $0x24] sm:$0xf]
    %v498 = vld [vmem:[#allocation8 + $0x28] sm:$0xf]
    %v499 = vld [vmem:[#allocation8 + $0x2c] sm:$0xf]
    %v500 = vld [vmem:[#allocation8 + $0x30] sm:$0xf]
    %v501 = vld [vmem:[#allocation8 + $0x34] sm:$0xf]
    %v502 = vld [vmem:[#allocation8 + $0x38] sm:$0xf]
    %v503 = vld [vmem:[#allocation8 + $0x3c] sm:$0xf]
    %v504 = vld [vmem:[%s6] sm:$0x1]
    %v506 = vlaneseq
    %v507 = vshrl.u32 %v506, 7
    %v508 = vsub.s32 0, %v507
    %v509 = vrot.slane %v504, %v508
    %v527 = vunpack.c.l.b16 %v488
    %v528 = vunpack.c.l.b16 %v489
    %v529 = vunpack.c.l.b16 %v490
    %v530 = vunpack.c.l.b16 %v491
    %v531 = vunpack.c.l.b16 %v492
    %v532 = vunpack.c.l.b16 %v493
    %v533 = vunpack.c.l.b16 %v494
    %v534 = vunpack.c.l.b16 %v495
    %v535 = vunpack.c.l.b16 %v496
    %v536 = vunpack.c.l.b16 %v497
    %v537 = vunpack.c.l.b16 %v498
    %v538 = vunpack.c.l.b16 %v499
    %v539 = vunpack.c.l.b16 %v500
    %v540 = vunpack.c.l.b16 %v501
    %v541 = vunpack.c.l.b16 %v502
    %v542 = vunpack.c.l.b16 %v503
    %v543 = vpack.c.b16 %v528, %v527
    %v544 = vpack.c.b16 %v530, %v529
    %v545 = vpack.c.b16 %v532, %v531
    %v546 = vpack.c.b16 %v534, %v533
    %v547 = vpack.c.b16 %v536, %v535
    %v548 = vpack.c.b16 %v538, %v537
    %v549 = vpack.c.b16 %v540, %v539
    %v550 = vpack.c.b16 %v542, %v541
    %559 = vmatprep.subr.bf16.mxu0 0
    %560 = vmatpush1.bf16.msra.mxu0 %v543
    %561 = vmatprep.subr.bf16.mxu0 0
    %562 = vmatpush1.bf16.msra.mxu0 %v544
    %563 = vmatprep.subr.bf16.mxu0 0
    %564 = vmatpush1.bf16.msra.mxu0 %v545
    %565 = vmatprep.subr.bf16.mxu0 0
    %566 = vmatpush1.bf16.msra.mxu0 %v546
    %567 = vmatprep.subr.bf16.mxu0 0
    %568 = vmatpush1.bf16.msra.mxu0 %v547
    %569 = vmatprep.subr.bf16.mxu0 0
    %570 = vmatpush1.bf16.msra.mxu0 %v548
    %571 = vmatprep.subr.bf16.mxu0 0
    %572 = vmatpush1.bf16.msra.mxu0 %v549
    %573 = vmatprep.subr.bf16.mxu0 0
    %574 = vmatpush1.bf16.msra.mxu0 %v550
    %575 = vmatprep.subr.bf16.mxu0 0
    %576 = vmatpush1.bf16.msra.mxu0 0
    %577 = vmatprep.subr.bf16.mxu0 0
    %578 = vmatpush1.bf16.msra.mxu0 0
    %579 = vmatprep.subr.bf16.mxu0 0
    %580 = vmatpush1.bf16.msra.mxu0 0
    %581 = vmatprep.subr.bf16.mxu0 0
    %582 = vmatpush1.bf16.msra.mxu0 0
    %583 = vmatprep.subr.bf16.mxu0 0
    %584 = vmatpush1.bf16.msra.mxu0 0
    %585 = vmatprep.subr.bf16.mxu0 0
    %586 = vmatpush1.bf16.msra.mxu0 0
    %587 = vmatprep.subr.bf16.mxu0 0
    %588 = vmatpush1.bf16.msra.mxu0 0
    %589 = vmatprep.subr.bf16.mxu0 0
    %590 = vmatpush1.bf16.msra.mxu0 0
    %591 = vmatprep.mubr.bf16.mxu0 0
    %592 = vmatmul.mubr.bf16.gmra.mrb[0].mxu0 %v487
    %v593 = vpop.f32.mrb[0].mxu0
    %v594 = vadd.f32 %v509, %v593
    %v595 = vpop.f32.mrb[0].mxu0
    %v596 = vpop.f32.mrb[0].mxu0
    %v597 = vpop.f32.mrb[0].mxu0
    %598 = vdwg.mxu0
    %599 = vst [vmem:[#allocation10] sm:$0xff] %v594
    // Predicated region
    $region46: #{tpu_custom_call.1} parent=1 // pred_check
      _
    $region47: #{tpu_custom_call.1} parent=1 // pred_check_branch
      %601 = sbr.rel (0) target = $region49
    $region48: #{tpu_custom_call.1} parent=1 // pred_region
      %s603 = ssub.s32 128, 128
      %604 = vsyncadd [#allocation4], %s603
      %s606 = sshll.u32 [#allocation10], 4
      %s607 = int_to_ptr.vmem [resolvable:$true] %s606
      %609 = dma.vmem_to_hbm [thread:$0]  %s607, 128, %s7, [#allocation4]
    $region49: #{tpu_custom_call.1} parent=1 // pred_fallthru
      _
    // Predicated region
    $region50: #{tpu_custom_call.1} parent=1 // pred_check
      _
    $region51: #{tpu_custom_call.1} parent=1 // pred_check_branch
      %611 = sbr.rel (0) target = $region53
    $region52: #{tpu_custom_call.1} parent=1 // pred_region
      %612 = dma.done [#allocation4], 128
    $region53: #{tpu_custom_call.1} parent=1 // pred_fallthru
      _
    %613 = vsyncpa [#allocation3], 1
    %614 = vsyncpa [#allocation6], 1
    %615 = vsyncpa [#allocation9], 1
    %616 = vsyncpa [#allocation4], 1

</llo_original>
